<compile_context>
chip_gen: v7x
topology: tpu7x:2x2x1
jax: 0.10.0
libtpu: 0.0.40
codegen_flags: <defaults>
</compile_context>

<pallas_src>
import functools
import math

import jax
import jax.numpy as jnp
from jax import lax
from jax.experimental import pallas as pl
from jax.experimental.pallas import tpu as pltpu


# ---------------------------------------------------------------------------
# Fused running-top-k step (one grid step along the tiled n_dirs axis)
# ---------------------------------------------------------------------------
def _topk_merge_step(scores, j, j_last, n_sel,
                     cand_vals_ref, cand_gidx_ref,
                     vals_out_ref, idx_out_ref):
    """Maintain a running top-`n_sel` (descending values, ties -> smallest
    global index, i.e. lax.top_k / torch.topk semantics) over a column-tiled
    score matrix.

    Single fused n_sel-iteration selection over the union of the running
    candidate slab (128 VMEM lanes) and the current (bt, nt) score tile,
    tracking global indices directly -- no separate per-tile select + merge
    passes, so the serialized cross-lane max/min chain per step is halved.
    """
    bt, nt = scores.shape
    npad = vals_out_ref.shape[-1]
    neg = jnp.float32(-jnp.inf)
    big = jnp.int32(2 ** 30)
    lane = lax.broadcasted_iota(jnp.int32, (bt, npad), 1)
    gidx_tile = j * nt + lax.broadcasted_iota(jnp.int32, (bt, nt), 1)

    @pl.when(j == 0)
    def _reset():
        cand_vals_ref[...] = jnp.full((bt, npad), -jnp.inf, jnp.float32)
        cand_gidx_ref[...] = jnp.full((bt, npad), big, jnp.int32)

    def body(s, carry):
        work, cv, cg, nv, ng = carry
        # row max over {tile, candidate slab}
        m = jnp.maximum(jnp.max(work, axis=-1, keepdims=True),
                        jnp.max(cv, axis=-1, keepdims=True))          # [bt, 1]
        # smallest global index attaining it (candidates come from earlier
        # tiles -> smaller indices -> win ties, matching lax.top_k)
        g = jnp.minimum(
            jnp.min(jnp.where(work == m, gidx_tile, big), axis=-1, keepdims=True),
            jnp.min(jnp.where(cv == m, cg, big), axis=-1, keepdims=True))
        nv = jnp.where(lane == s, m, nv)
        ng = jnp.where(lane == s, g, ng)
        work = jnp.where(gidx_tile == g, neg, work)
        cv = jnp.where(cg == g, neg, cv)
        return work, cv, cg, nv, ng

    _, _, _, new_vals, new_gidx = lax.fori_loop(
        0, n_sel, body,
        (scores.astype(jnp.float32),
         cand_vals_ref[...], cand_gidx_ref[...],
         jnp.full((bt, npad), -jnp.inf, jnp.float32),
         jnp.full((bt, npad), big, jnp.int32)))

    cand_vals_ref[...] = new_vals
    cand_gidx_ref[...] = new_gidx

    @pl.when(j == j_last)
    def _finalize():
        vals_out_ref[...] = jnp.maximum(new_vals, 0.0)   # relu; -inf pads -> 0
        idx_out_ref[...] = jnp.where(lane < n_sel, new_gidx, 0)


# ---------------------------------------------------------------------------
# Kernel 1: encoder matmul + running top-(4k)
# ---------------------------------------------------------------------------
def encode_topk_kernel(xc_ref, wencT_ref, latent_bias_ref,
                       pre_act_ref, mvals_ref, midx_ref,
                       cand_vals_ref, cand_gidx_ref, *, k):
    j = pl.program_id(1)
    # xc is already (x - pre_bias) in bf16 (pre-cast in the wrapper).
    pre_act = jnp.dot(xc_ref[...], wencT_ref[...],
                      preferred_element_type=jnp.float32) + latent_bias_ref[...]
    pre_act_ref[...] = pre_act
    _topk_merge_step(pre_act, j, pl.num_programs(1) - 1, 4 * k,
                     cand_vals_ref, cand_gidx_ref, mvals_ref, midx_ref)


# ---------------------------------------------------------------------------
# Kernel 2: sparse decode (recons + multik_recons) fused with aux-k selection
# ---------------------------------------------------------------------------
def decode_auxk_kernel(mvals_ref, midx_ref, pre_act_ref, dead_mask_ref,
                       wdecT_ref, pre_bias_ref,
                       recons_ref, mk_recons_ref, avals_ref, aidx_ref,
                       acc_ref, cand_vals_ref, cand_gidx_ref, *, k, auxk):
    j = pl.program_id(1)
    j_last = pl.num_programs(1) - 1
    bt = mvals_ref.shape[0]
    nt = wdecT_ref.shape[0]

    @pl.when(j == 0)
    def _init():
        acc_ref[...] = jnp.zeros_like(acc_ref)

    # ---- rebuild the stacked sparse latent tile [top-k ; multi-k] ---------
    vals = mvals_ref[...]                                     # (bt, PAD) f32
    idx = midx_ref[...]                                       # (bt, PAD) i32
    lane = lax.broadcasted_iota(jnp.int32, vals.shape, 1)
    vals_tk = jnp.where(lane < k, vals, 0.0)                  # pre-masked top-k
    vals_st = jnp.concatenate([vals_tk, vals], axis=0)        # (2*bt, PAD)
    idx_st = jnp.concatenate([idx, idx], axis=0)              # (2*bt, PAD)
    gidx = j * nt + lax.broadcasted_iota(jnp.int32, (2 * bt, nt), 1)

    lat = jnp.zeros((2 * bt, nt), jnp.float32)
    # TODO(synk): at real k (4k = 64) switch to lax.fori_loop(..., unroll=8)
    # over dynamic lane slices to bound code size / vreg pressure.
    for s in range(4 * k):
        lat = lat + jnp.where(idx_st[:, s:s + 1] == gidx,
                              vals_st[:, s:s + 1], 0.0)

    # Single stacked-LHS MXU matmul (one stream instead of two small ones);
    # accumulate both reconstructions in one resident f32 VMEM scratch.
    acc_ref[...] += jnp.dot(lat.astype(wdecT_ref.dtype), wdecT_ref[...],
                            preferred_element_type=jnp.float32)

    # ---- aux-k over dead-masked pre-activations (shares the n_dirs sweep) -
    # NOTE: multiplicative masking (not -inf), exactly like the PyTorch module.
    scores = pre_act_ref[...] * dead_mask_ref[...]
    _topk_merge_step(scores, j, j_last, auxk,
                     cand_vals_ref, cand_gidx_ref, avals_ref, aidx_ref)

    @pl.when(j == j_last)
    def _finalize():
        out = acc_ref[...] + pre_bias_ref[...]
        recons_ref[...] = out[:bt]
        mk_recons_ref[...] = out[bt:]


# ---------------------------------------------------------------------------
# Wrapper
# ---------------------------------------------------------------------------
def prepare_params(params, compute_dtype=jnp.bfloat16):
    """One-time parameter prep (would live at module init in a real model).

    Weights are transposed ONCE so both kernels run standard [M,K]x[K,N] MXU
    matmuls with no in-kernel transposes, and cast to bf16.
    TODO(synk): per-channel int8 (v5e/v6e) / fp8-e4m3 (v7x) weight quant.
    """
    return {
        "W_enc_T": jnp.asarray(params["W_enc"]).T.astype(compute_dtype),  # [d_model, n_dirs]
        "W_dec_T": jnp.asarray(params["W_dec"]).T.astype(compute_dtype),  # [n_dirs, d_model]
        "pre_bias": params["pre_bias"].astype(jnp.float32).reshape(1, -1),
        "latent_bias": params["latent_bias"].astype(jnp.float32).reshape(1, -1),
    }


def fast_autoencoder_forward(x, prep, stats_last_nonzero, *, k, auxk,
                             multik=None, dead_steps_threshold=266, theta=0.1,
                             bt=8, nt=256):
    """Forward pass. Returns (recons, info, new_stats_last_nonzero).

    `multik` is accepted for parity with the PyTorch module but unused (the
    reference forward hard-codes 4 * k).
    """
    del multik
    B, d_model = x.shape
    n_dirs = prep["W_enc_T"].shape[1]
    f32 = jnp.float32
    PAD = 128  # lane-padded width for the small top-k outputs

    assert B % bt == 0 and bt % 8 == 0
    assert d_model % 128 == 0
    assert n_dirs % nt == 0 and nt % 128 == 0
    assert 4 * k <= PAD and auxk <= PAD
    assert nt >= 4 * k and nt >= auxk

    nb = B // bt
    njt = n_dirs // nt
    mega = pltpu.CompilerParams(dimension_semantics=("parallel", "arbitrary"))

    # Pre-center + pre-cast once (trivial XLA elementwise op); the encode
    # kernel then streams a bf16 x tile and does no per-step subtract/cast.
    cdt = prep["W_enc_T"].dtype
    xc = (x.astype(f32) - prep["pre_bias"]).astype(cdt)

    # --------------------------- encode + top-(4k) -------------------------
    pre_act, mvals_pad, midx_pad = pl.pallas_call(
        functools.partial(encode_topk_kernel, k=k),
        out_shape=(jax.ShapeDtypeStruct((B, n_dirs), f32),      # latents_pre_act
                   jax.ShapeDtypeStruct((B, PAD), f32),          # multik values (padded)
                   jax.ShapeDtypeStruct((B, PAD), jnp.int32)),   # multik indices (padded)
        grid_spec=pltpu.PrefetchScalarGridSpec(
            num_scalar_prefetch=0,
            grid=(nb, njt),
            in_specs=[
                pl.BlockSpec((bt, d_model), lambda i, j: (i, 0)),
                pl.BlockSpec((d_model, nt), lambda i, j: (0, j)),
                pl.BlockSpec((1, nt), lambda i, j: (0, j)),
            ],
            out_specs=[
                pl.BlockSpec((bt, nt), lambda i, j: (i, j)),
                pl.BlockSpec((bt, PAD), lambda i, j: (i, 0)),
                pl.BlockSpec((bt, PAD), lambda i, j: (i, 0)),
            ],
            scratch_shapes=[pltpu.VMEM((bt, PAD), f32),
                            pltpu.VMEM((bt, PAD), jnp.int32)],
        ),
        compiler_params=mega,
    )(xc, prep["W_enc_T"], prep["latent_bias"])

    multik_values = mvals_pad[:, :4 * k]
    multik_indices = midx_pad[:, :4 * k]
    topk_values = mvals_pad[:, :k]
    topk_indices = midx_pad[:, :k]

    # latents_jump is a trivial elementwise op -> plain XLA (no extra
    # [B, n_dirs] f32 HBM store out of the encode kernel).
    latents_jump = jnp.where(pre_act < theta, 0.0, pre_act)

    # ----- stateful buffer update (needs ALL-batch top-k -> plain JAX glue) -
    stats = stats_last_nonzero + 1
    stats = stats.at[topk_indices.reshape(-1)].set(0)
    dead_mask = (stats > dead_steps_threshold).astype(f32).reshape(1, n_dirs)

    # ---------------------- sparse decode + aux-k --------------------------
    recons, multik_recons, avals_pad, aidx_pad = pl.pallas_call(
        functools.partial(decode_auxk_kernel, k=k, auxk=auxk),
        out_shape=(jax.ShapeDtypeStruct((B, d_model), f32),      # recons
                   jax.ShapeDtypeStruct((B, d_model), f32),      # multik_recons
                   jax.ShapeDtypeStruct((B, PAD), f32),          # auxk values (padded)
                   jax.ShapeDtypeStruct((B, PAD), jnp.int32)),   # auxk indices (padded)
        grid_spec=pltpu.PrefetchScalarGridSpec(
            num_scalar_prefetch=0,
            grid=(nb, njt),
            in_specs=[
                pl.BlockSpec((bt, PAD), lambda i, j: (i, 0)),
                pl.BlockSpec((bt, PAD), lambda i, j: (i, 0)),
                pl.BlockSpec((bt, nt), lambda i, j: (i, j)),
                pl.BlockSpec((1, nt), lambda i, j: (0, j)),
                pl.BlockSpec((nt, d_model), lambda i, j: (j, 0)),
                pl.BlockSpec((1, d_model), lambda i, j: (0, 0)),
            ],
            out_specs=[
                pl.BlockSpec((bt, d_model), lambda i, j: (i, 0)),
                pl.BlockSpec((bt, d_model), lambda i, j: (i, 0)),
                pl.BlockSpec((bt, PAD), lambda i, j: (i, 0)),
                pl.BlockSpec((bt, PAD), lambda i, j: (i, 0)),
            ],
            scratch_shapes=[pltpu.VMEM((2 * bt, d_model), f32),
                            pltpu.VMEM((bt, PAD), f32),
                            pltpu.VMEM((bt, PAD), jnp.int32)],
        ),
        compiler_params=mega,
    )(mvals_pad, midx_pad, pre_act, dead_mask, prep["W_dec_T"], prep["pre_bias"])

    auxk_values = avals_pad[:, :auxk]
    auxk_indices = aidx_pad[:, :auxk]

    info = {
        "topk_indices": topk_indices,
        "topk_values": topk_values,
        "multik_indices": multik_indices,
        "multik_values": multik_values,
        "multik_recons": multik_recons,
        "auxk_indices": auxk_indices,
        "auxk_values": auxk_values,
        "latents_pre_act": pre_act,
        "latents_jump": latents_jump,
    }
    return recons, info, stats


# ---------------------------------------------------------------------------
# Self-check
# ---------------------------------------------------------------------------
if __name__ == "__main__":
    B, d_model, n_dirs = 16, 256, 512
    k, auxk, multik = 4, 8, 16
    dead_steps_threshold = 266
    theta = 0.1
    bt, nt = 8, 256

    key = jax.random.PRNGKey(0)
    ks = jax.random.split(key, 6)
    params = {
        "W_enc": jax.random.normal(ks[0], (n_dirs, d_model), jnp.float32)
        / math.sqrt(d_model),
        "W_dec": jax.random.normal(ks[1], (d_model, n_dirs), jnp.float32)
        / math.sqrt(n_dirs),
        # Module __init__ zero-initializes the biases; use small random values
        # so the bias paths are actually exercised.
        "pre_bias": 0.1 * jax.random.normal(ks[2], (d_model,), jnp.float32),
        "latent_bias": 0.1 * jax.random.normal(ks[3], (n_dirs,), jnp.float32),
    }
    x = jax.random.normal(ks[4], (B, d_model), jnp.float32)
    # Random "steps since nonzero" so some features are dead -> aux-k exercised.
    stats0 = jax.random.randint(ks[5], (n_dirs,), 0, 600, jnp.int32)

    prep = prepare_params(params)  # one-time transpose + bf16 weight prep

    fwd = jax.jit(functools.partial(
        fast_autoencoder_forward, k=k, auxk=auxk, multik=multik,
        dead_steps_threshold=dead_steps_threshold, theta=theta, bt=bt, nt=nt))
    recons, info, stats = fwd(x, prep, stats0)
    jax.tree_util.tree_map(jax.block_until_ready, (recons, info, stats))

    # ---------------- checks (same bf16 weight quantization) ---------------
    f32 = jnp.float32
    cdt = prep["W_enc_T"].dtype
    xc = (x - prep["pre_bias"]).astype(cdt)
    ref_pre_act = jnp.dot(xc, prep["W_enc_T"],
                          preferred_element_type=f32) + prep["latent_bias"]
    assert jnp.allclose(info["latents_pre_act"], ref_pre_act, atol=1e-3, rtol=1e-3)

    pre_act = info["latents_pre_act"]
    mv_chk, mi_chk = lax.top_k(pre_act, 4 * k)
    assert jnp.array_equal(info["multik_indices"], mi_chk)
    assert jnp.allclose(info["multik_values"], jnp.maximum(mv_chk, 0.0),
                        atol=1e-5, rtol=1e-5)
    assert jnp.array_equal(info["topk_indices"], mi_chk[:, :k])
    assert jnp.allclose(info["topk_values"], jnp.maximum(mv_chk[:, :k], 0.0),
                        atol=1e-5, rtol=1e-5)
    rv, _ = lax.top_k(ref_pre_act, 4 * k)
    assert jnp.allclose(info["multik_values"], jnp.maximum(rv, 0.0),
                        atol=1e-3, rtol=1e-3)

    assert jnp.allclose(info["latents_jump"],
                        jnp.where(pre_act < theta, 0.0, pre_act),
                        atol=1e-6, rtol=1e-6)

    stats_ref = (stats0 + 1).at[info["topk_indices"].reshape(-1)].set(0)
    assert jnp.array_equal(stats, stats_ref)

    dead_mask = (stats_ref > dead_steps_threshold).astype(f32)
    av_chk, ai_chk = lax.top_k(pre_act * dead_mask[None, :], auxk)
    assert jnp.array_equal(info["auxk_indices"], ai_chk)
    assert jnp.allclose(info["auxk_values"], jnp.maximum(av_chk, 0.0),
                        atol=1e-5, rtol=1e-5)

    rows = jnp.arange(B)[:, None]
    lat_tk = jnp.zeros((B, n_dirs), f32).at[rows, info["topk_indices"]].set(
        info["topk_values"])
    lat_mk = jnp.zeros((B, n_dirs), f32).at[rows, info["multik_indices"]].set(
        info["multik_values"])
    ref_recons = jnp.dot(lat_tk.astype(cdt), prep["W_dec_T"],
                         preferred_element_type=f32) + prep["pre_bias"]
    ref_mk_recons = jnp.dot(lat_mk.astype(cdt), prep["W_dec_T"],
                            preferred_element_type=f32) + prep["pre_bias"]
    assert jnp.allclose(recons, ref_recons, atol=1e-3, rtol=1e-3)
    assert jnp.allclose(info["multik_recons"], ref_mk_recons, atol=1e-3, rtol=1e-3)

    print("KERNEL_OK")
</pallas_src>

<mosaic_0001>
module attributes {stable_mosaic.version = 11 : i64} {
  func.func @encode_topk_kernel(%arg0: i32, %arg1: i32, %arg2: memref<8x256xbf16, #tpu.memory_space<vmem>>, %arg3: memref<256x256xbf16, #tpu.memory_space<vmem>>, %arg4: memref<1x256xf32, #tpu.memory_space<vmem>>, %arg5: memref<8x256xf32, #tpu.memory_space<vmem>>, %arg6: memref<8x128xf32, #tpu.memory_space<vmem>>, %arg7: memref<8x128xi32, #tpu.memory_space<vmem>>, %arg8: memref<8x128xf32, #tpu.memory_space<vmem>>, %arg9: memref<8x128xi32, #tpu.memory_space<vmem>>) attributes {dimension_semantics = [#tpu.dimension_semantics<parallel>, #tpu.dimension_semantics<arbitrary>], iteration_bounds = array<i64: 2, 2>, scalar_prefetch = 0 : i64, scratch_operands = 2 : i64, tpu.core_type = #tpu.core_type<tc>, window_params = [{transform_indices = @transform_0, window_bounds = array<i64: 8, 256>}, {transform_indices = @transform_1, window_bounds = array<i64: 256, 256>}, {transform_indices = @transform_2, window_bounds = array<i64: 1, 256>}, {transform_indices = @transform_3, window_bounds = array<i64: 8, 256>}, {transform_indices = @transform_4, window_bounds = array<i64: 8, 128>}, {transform_indices = @transform_5, window_bounds = array<i64: 8, 128>}]} {
    %c0 = arith.constant 0 : index
    %c0_0 = arith.constant 0 : index
    %0 = vector.load %arg2[%c0, %c0_0] : memref<8x256xbf16, #tpu.memory_space<vmem>>, vector<8x256xbf16>
    %c0_1 = arith.constant 0 : index
    %c0_2 = arith.constant 0 : index
    %1 = vector.load %arg3[%c0_1, %c0_2] : memref<256x256xbf16, #tpu.memory_space<vmem>>, vector<256x256xbf16>
    %cst = arith.constant dense<0.000000e+00> : vector<8x256xf32>
    %2 = tpu.matmul %0, %1, %cst {dimension_numbers = #tpu.dot_dimension_numbers<[1], [0], [0], [1], [0, 0, 1, 1], [], []>} : vector<8x256xbf16>, vector<256x256xbf16>, vector<8x256xf32> -> vector<8x256xf32>
    %c0_3 = arith.constant 0 : index
    %c0_4 = arith.constant 0 : index
    %3 = vector.load %arg4[%c0_3, %c0_4] : memref<1x256xf32, #tpu.memory_space<vmem>>, vector<1x256xf32>
    %4 = vector.broadcast %3 : vector<1x256xf32> to vector<8x256xf32>
    %5 = arith.addf %2, %4 : vector<8x256xf32>
    %c0_5 = arith.constant 0 : index
    %c0_6 = arith.constant 0 : index
    %6 = vector.load %arg5[%c0_5, %c0_6] : memref<8x256xf32, #tpu.memory_space<vmem>>, vector<8x256xf32>
    tpu.vector_store %arg5[%c0_5, %c0_6], %5 {strides = array<i32>} : memref<8x256xf32, #tpu.memory_space<vmem>>, vector<8x256xf32>,
    %7 = tpu.iota {dimensions = array<i32: 1>} : vector<8x128xi32>
    %c256_i32 = arith.constant 256 : i32
    %8 = arith.muli %arg1, %c256_i32 : i32
    %9 = tpu.iota {dimensions = array<i32: 1>} : vector<8x256xi32>
    %10 = vector.broadcast %8 : i32 to vector<8x256xi32>
    %11 = arith.addi %10, %9 : vector<8x256xi32>
    %c0_i32 = arith.constant 0 : i32
    %12 = arith.cmpi eq, %arg1, %c0_i32 : i32
    %13 = arith.extui %12 : i1 to i32
    %c1073741824_i32 = arith.constant 1073741824 : i32
    %c0_i32_7 = arith.constant 0 : i32
    %14 = arith.cmpi ne, %13, %c0_i32_7 : i32
    scf.if %14 {
      %cst_24 = arith.constant 0xFF800000 : f32
      %26 = vector.broadcast %cst_24 : f32 to vector<8x128xf32>
      %c0_25 = arith.constant 0 : index
      %c0_26 = arith.constant 0 : index
      %27 = vector.load %arg8[%c0_25, %c0_26] : memref<8x128xf32, #tpu.memory_space<vmem>>, vector<8x128xf32>
      tpu.vector_store %arg8[%c0_25, %c0_26], %26 {strides = array<i32>} : memref<8x128xf32, #tpu.memory_space<vmem>>, vector<8x128xf32>,
      %28 = vector.broadcast %c1073741824_i32 : i32 to vector<8x128xi32>
      %c0_27 = arith.constant 0 : index
      %c0_28 = arith.constant 0 : index
      %29 = vector.load %arg9[%c0_27, %c0_28] : memref<8x128xi32, #tpu.memory_space<vmem>>, vector<8x128xi32>
      tpu.vector_store %arg9[%c0_27, %c0_28], %28 {strides = array<i32>} : memref<8x128xi32, #tpu.memory_space<vmem>>, vector<8x128xi32>,
    } else {
    }
    %c0_8 = arith.constant 0 : index
    %c0_9 = arith.constant 0 : index
    %15 = vector.load %arg8[%c0_8, %c0_9] : memref<8x128xf32, #tpu.memory_space<vmem>>, vector<8x128xf32>
    %c0_10 = arith.constant 0 : index
    %c0_11 = arith.constant 0 : index
    %16 = vector.load %arg9[%c0_10, %c0_11] : memref<8x128xi32, #tpu.memory_space<vmem>>, vector<8x128xi32>
    %cst_12 = arith.constant 0xFF800000 : f32
    %17 = vector.broadcast %cst_12 : f32 to vector<8x128xf32>
    %c1073741824_i32_13 = arith.constant 1073741824 : i32
    %18 = vector.broadcast %c1073741824_i32_13 : i32 to vector<8x128xi32>
    %c1073741824_i32_14 = arith.constant 1073741824 : i32
    %cst_15 = arith.constant 0xFF800000 : f32
    %c0_i32_16 = arith.constant 0 : i32
    %c16_i32 = arith.constant 16 : i32
    %19 = arith.addi %c0_i32_16, %c16_i32 : i32
    %c1_i32 = arith.constant 1 : i32
    %20:4 = scf.for %arg10 = %c0_i32_16 to %19 step %c1_i32 iter_args(%arg11 = %5, %arg12 = %15, %arg13 = %17, %arg14 = %18) -> (vector<8x256xf32>, vector<8x128xf32>, vector<8x128xf32>, vector<8x128xi32>)  : i32 {
      %cst_24 = arith.constant dense<0xFF800000> : vector<8xf32>
      %26 = vector.multi_reduction <maximumf>, %arg11, %cst_24 [1] : vector<8x256xf32> to vector<8xf32>
      %27 = vector.shape_cast %26 : vector<8xf32> to vector<8x1xf32>
      %cst_25 = arith.constant dense<0xFF800000> : vector<8xf32>
      %28 = vector.multi_reduction <maximumf>, %arg12, %cst_25 [1] : vector<8x128xf32> to vector<8xf32>
      %29 = vector.shape_cast %28 : vector<8xf32> to vector<8x1xf32>
      %30 = arith.maximumf %27, %29 : vector<8x1xf32>
      %31 = vector.broadcast %30 : vector<8x1xf32> to vector<8x256xf32>
      %32 = arith.cmpf oeq, %arg11, %31 : vector<8x256xf32>
      %33 = vector.broadcast %c1073741824_i32_14 : i32 to vector<8x256xi32>
      %34 = arith.select %32, %11, %33 : vector<8x256xi1>, vector<8x256xi32>
      %cst_26 = arith.constant dense<2147483647> : vector<8xi32>
      %35 = vector.multi_reduction <minsi>, %34, %cst_26 [1] : vector<8x256xi32> to vector<8xi32>
      %36 = vector.shape_cast %35 : vector<8xi32> to vector<8x1xi32>
      %37 = vector.broadcast %30 : vector<8x1xf32> to vector<8x128xf32>
      %38 = arith.cmpf oeq, %arg12, %37 : vector<8x128xf32>
      %39 = vector.broadcast %c1073741824_i32_14 : i32 to vector<8x128xi32>
      %40 = arith.select %38, %16, %39 : vector<8x128xi1>, vector<8x128xi32>
      %cst_27 = arith.constant dense<2147483647> : vector<8xi32>
      %41 = vector.multi_reduction <minsi>, %40, %cst_27 [1] : vector<8x128xi32> to vector<8xi32>
      %42 = vector.shape_cast %41 : vector<8xi32> to vector<8x1xi32>
      %43 = arith.minsi %36, %42 : vector<8x1xi32>
      %44 = vector.broadcast %arg10 : i32 to vector<8x128xi32>
      %45 = arith.cmpi eq, %7, %44 : vector<8x128xi32>
      %46 = vector.shape_cast %30 : vector<8x1xf32> to vector<8x1xf32>
      %47 = vector.broadcast %46 : vector<8x1xf32> to vector<8x128xf32>
      %48 = arith.select %45, %47, %arg13 : vector<8x128xi1>, vector<8x128xf32>
      %49 = vector.broadcast %arg10 : i32 to vector<8x128xi32>
      %50 = arith.cmpi eq, %7, %49 : vector<8x128xi32>
      %51 = vector.shape_cast %43 : vector<8x1xi32> to vector<8x1xi32>
      %52 = vector.broadcast %51 : vector<8x1xi32> to vector<8x128xi32>
      %53 = arith.select %50, %52, %arg14 : vector<8x128xi1>, vector<8x128xi32>
      %54 = vector.broadcast %43 : vector<8x1xi32> to vector<8x256xi32>
      %55 = arith.cmpi eq, %11, %54 : vector<8x256xi32>
      %56 = vector.broadcast %cst_15 : f32 to vector<8x256xf32>
      %57 = arith.select %55, %56, %arg11 : vector<8x256xi1>, vector<8x256xf32>
      %58 = vector.broadcast %43 : vector<8x1xi32> to vector<8x128xi32>
      %59 = arith.cmpi eq, %16, %58 : vector<8x128xi32>
      %60 = vector.broadcast %cst_15 : f32 to vector<8x128xf32>
      %61 = arith.select %59, %60, %arg12 : vector<8x128xi1>, vector<8x128xf32>
      scf.yield %57, %61, %48, %53 : vector<8x256xf32>, vector<8x128xf32>, vector<8x128xf32>, vector<8x128xi32>
    }
    %c16_i32_17 = arith.constant 16 : i32
    %c0_18 = arith.constant 0 : index
    %c0_19 = arith.constant 0 : index
    %21 = vector.load %arg8[%c0_18, %c0_19] : memref<8x128xf32, #tpu.memory_space<vmem>>, vector<8x128xf32>
    tpu.vector_store %arg8[%c0_18, %c0_19], %20#2 {strides = array<i32>} : memref<8x128xf32, #tpu.memory_space<vmem>>, vector<8x128xf32>,
    %c0_20 = arith.constant 0 : index
    %c0_21 = arith.constant 0 : index
    %22 = vector.load %arg9[%c0_20, %c0_21] : memref<8x128xi32, #tpu.memory_space<vmem>>, vector<8x128xi32>
    tpu.vector_store %arg9[%c0_20, %c0_21], %20#3 {strides = array<i32>} : memref<8x128xi32, #tpu.memory_space<vmem>>, vector<8x128xi32>,
    %c1_i32_22 = arith.constant 1 : i32
    %23 = arith.cmpi eq, %arg1, %c1_i32_22 : i32
    %24 = arith.extui %23 : i1 to i32
    %c0_i32_23 = arith.constant 0 : i32
    %25 = arith.cmpi ne, %24, %c0_i32_23 : i32
    scf.if %25 {
      %cst_24 = arith.constant 0.000000e+00 : f32
      %26 = vector.broadcast %cst_24 : f32 to vector<8x128xf32>
      %27 = arith.maximumf %20#2, %26 : vector<8x128xf32>
      %c0_25 = arith.constant 0 : index
      %c0_26 = arith.constant 0 : index
      %28 = vector.load %arg6[%c0_25, %c0_26] : memref<8x128xf32, #tpu.memory_space<vmem>>, vector<8x128xf32>
      tpu.vector_store %arg6[%c0_25, %c0_26], %27 {strides = array<i32>} : memref<8x128xf32, #tpu.memory_space<vmem>>, vector<8x128xf32>,
      %c16_i32_27 = arith.constant 16 : i32
      %29 = vector.broadcast %c16_i32_27 : i32 to vector<8x128xi32>
      %30 = arith.cmpi slt, %7, %29 : vector<8x128xi32>
      %c0_i32_28 = arith.constant 0 : i32
      %31 = vector.broadcast %c0_i32_28 : i32 to vector<8x128xi32>
      %32 = arith.select %30, %20#3, %31 : vector<8x128xi1>, vector<8x128xi32>
      %c0_29 = arith.constant 0 : index
      %c0_30 = arith.constant 0 : index
      %33 = vector.load %arg7[%c0_29, %c0_30] : memref<8x128xi32, #tpu.memory_space<vmem>>, vector<8x128xi32>
      tpu.vector_store %arg7[%c0_29, %c0_30], %32 {strides = array<i32>} : memref<8x128xi32, #tpu.memory_space<vmem>>, vector<8x128xi32>,
    } else {
    }
    return
  }
  func.func @transform_0(%arg0: i32, %arg1: i32) -> (i32, i32) {
    %c0_i32 = arith.constant 0 : i32
    %c0_i32_0 = arith.constant 0 : i32
    return %arg0, %c0_i32 : i32, i32
  }
  func.func @transform_1(%arg0: i32, %arg1: i32) -> (i32, i32) {
    %c0_i32 = arith.constant 0 : i32
    %c0_i32_0 = arith.constant 0 : i32
    return %c0_i32, %arg1 : i32, i32
  }
  func.func @transform_2(%arg0: i32, %arg1: i32) -> (i32, i32) {
    %c0_i32 = arith.constant 0 : i32
    %c0_i32_0 = arith.constant 0 : i32
    return %c0_i32, %arg1 : i32, i32
  }
  func.func @transform_3(%arg0: i32, %arg1: i32) -> (i32, i32) {
    %c0_i32 = arith.constant 0 : i32
    return %arg0, %arg1 : i32, i32
  }
  func.func @transform_4(%arg0: i32, %arg1: i32) -> (i32, i32) {
    %c0_i32 = arith.constant 0 : i32
    %c0_i32_0 = arith.constant 0 : i32
    return %arg0, %c0_i32 : i32, i32
  }
  func.func @transform_5(%arg0: i32, %arg1: i32) -> (i32, i32) {
    %c0_i32 = arith.constant 0 : i32
    %c0_i32_0 = arith.constant 0 : i32
    return %arg0, %c0_i32 : i32, i32
  }
}

module attributes {stable_mosaic.version = 11 : i64} {
  func.func @decode_auxk_kernel(%arg0: i32, %arg1: i32, %arg2: memref<8x128xf32, #tpu.memory_space<vmem>>, %arg3: memref<8x128xi32, #tpu.memory_space<vmem>>, %arg4: memref<8x256xf32, #tpu.memory_space<vmem>>, %arg5: memref<1x256xf32, #tpu.memory_space<vmem>>, %arg6: memref<256x256xbf16, #tpu.memory_space<vmem>>, %arg7: memref<1x256xf32, #tpu.memory_space<vmem>>, %arg8: memref<8x256xf32, #tpu.memory_space<vmem>>, %arg9: memref<8x256xf32, #tpu.memory_space<vmem>>, %arg10: memref<8x128xf32, #tpu.memory_space<vmem>>, %arg11: memref<8x128xi32, #tpu.memory_space<vmem>>, %arg12: memref<16x256xf32, #tpu.memory_space<vmem>>, %arg13: memref<8x128xf32, #tpu.memory_space<vmem>>, %arg14: memref<8x128xi32, #tpu.memory_space<vmem>>) attributes {dimension_semantics = [#tpu.dimension_semantics<parallel>, #tpu.dimension_semantics<arbitrary>], iteration_bounds = array<i64: 2, 2>, scalar_prefetch = 0 : i64, scratch_operands = 3 : i64, tpu.core_type = #tpu.core_type<tc>, window_params = [{transform_indices = @transform_0, window_bounds = array<i64: 8, 128>}, {transform_indices = @transform_1, window_bounds = array<i64: 8, 128>}, {transform_indices = @transform_2, window_bounds = array<i64: 8, 256>}, {transform_indices = @transform_3, window_bounds = array<i64: 1, 256>}, {transform_indices = @transform_4, window_bounds = array<i64: 256, 256>}, {pipeline_mode = #tpu.pipeline_mode<synchronous>, transform_indices = @transform_5, window_bounds = array<i64: 1, 256>}, {transform_indices = @transform_6, window_bounds = array<i64: 8, 256>}, {transform_indices = @transform_7, window_bounds = array<i64: 8, 256>}, {transform_indices = @transform_8, window_bounds = array<i64: 8, 128>}, {transform_indices = @transform_9, window_bounds = array<i64: 8, 128>}]} {
    %c0_i32 = arith.constant 0 : i32
    %0 = arith.cmpi eq, %arg1, %c0_i32 : i32
    %1 = arith.extui %0 : i1 to i32
    %c0_i32_0 = arith.constant 0 : i32
    %2 = arith.cmpi ne, %1, %c0_i32_0 : i32
    scf.if %2 {
      %cst_53 = arith.constant 0.000000e+00 : f32
      %193 = vector.broadcast %cst_53 : f32 to vector<16x256xf32>
      %c0_54 = arith.constant 0 : index
      %c0_55 = arith.constant 0 : index
      %194 = vector.load %arg12[%c0_54, %c0_55] : memref<16x256xf32, #tpu.memory_space<vmem>>, vector<16x256xf32>
      tpu.vector_store %arg12[%c0_54, %c0_55], %193 {strides = array<i32>} : memref<16x256xf32, #tpu.memory_space<vmem>>, vector<16x256xf32>,
    } else {
    }
    %c0 = arith.constant 0 : index
    %c0_1 = arith.constant 0 : index
    %3 = vector.load %arg2[%c0, %c0_1] : memref<8x128xf32, #tpu.memory_space<vmem>>, vector<8x128xf32>
    %c0_2 = arith.constant 0 : index
    %c0_3 = arith.constant 0 : index
    %4 = vector.load %arg3[%c0_2, %c0_3] : memref<8x128xi32, #tpu.memory_space<vmem>>, vector<8x128xi32>
    %5 = tpu.iota {dimensions = array<i32: 1>} : vector<8x128xi32>
    %c4_i32 = arith.constant 4 : i32
    %6 = vector.broadcast %c4_i32 : i32 to vector<8x128xi32>
    %7 = arith.cmpi slt, %5, %6 : vector<8x128xi32>
    %cst = arith.constant 0.000000e+00 : f32
    %8 = vector.broadcast %cst : f32 to vector<8x128xf32>
    %9 = arith.select %7, %3, %8 : vector<8x128xi1>, vector<8x128xf32>
    %10 = tpu.concatenate %9, %3 in 0 : vector<8x128xf32>, vector<8x128xf32> -> vector<16x128xf32>
    %11 = tpu.concatenate %4, %4 in 0 : vector<8x128xi32>, vector<8x128xi32> -> vector<16x128xi32>
    %c256_i32 = arith.constant 256 : i32
    %12 = arith.muli %arg1, %c256_i32 : i32
    %13 = tpu.iota {dimensions = array<i32: 1>} : vector<16x256xi32>
    %14 = vector.broadcast %12 : i32 to vector<16x256xi32>
    %15 = arith.addi %14, %13 : vector<16x256xi32>
    %cst_4 = arith.constant 0.000000e+00 : f32
    %16 = vector.broadcast %cst_4 : f32 to vector<16x256xf32>
    %17 = vector.extract_strided_slice %11 {offsets = [0, 0], sizes = [16, 1], strides = [1, 1]} : vector<16x128xi32> to vector<16x1xi32>
    %18 = vector.broadcast %17 : vector<16x1xi32> to vector<16x256xi32>
    %19 = arith.cmpi eq, %18, %15 : vector<16x256xi32>
    %20 = vector.extract_strided_slice %10 {offsets = [0, 0], sizes = [16, 1], strides = [1, 1]} : vector<16x128xf32> to vector<16x1xf32>
    %cst_5 = arith.constant 0.000000e+00 : f32
    %21 = vector.shape_cast %20 : vector<16x1xf32> to vector<16x1xf32>
    %22 = vector.broadcast %21 : vector<16x1xf32> to vector<16x256xf32>
    %23 = vector.broadcast %cst_5 : f32 to vector<16x256xf32>
    %24 = arith.select %19, %22, %23 : vector<16x256xi1>, vector<16x256xf32>
    %25 = arith.addf %16, %24 : vector<16x256xf32>
    %26 = vector.extract_strided_slice %11 {offsets = [0, 1], sizes = [16, 1], strides = [1, 1]} : vector<16x128xi32> to vector<16x1xi32>
    %27 = vector.broadcast %26 : vector<16x1xi32> to vector<16x256xi32>
    %28 = arith.cmpi eq, %27, %15 : vector<16x256xi32>
    %29 = vector.extract_strided_slice %10 {offsets = [0, 1], sizes = [16, 1], strides = [1, 1]} : vector<16x128xf32> to vector<16x1xf32>
    %cst_6 = arith.constant 0.000000e+00 : f32
    %30 = vector.shape_cast %29 : vector<16x1xf32> to vector<16x1xf32>
    %31 = vector.broadcast %30 : vector<16x1xf32> to vector<16x256xf32>
    %32 = vector.broadcast %cst_6 : f32 to vector<16x256xf32>
    %33 = arith.select %28, %31, %32 : vector<16x256xi1>, vector<16x256xf32>
    %34 = arith.addf %25, %33 : vector<16x256xf32>
    %35 = vector.extract_strided_slice %11 {offsets = [0, 2], sizes = [16, 1], strides = [1, 1]} : vector<16x128xi32> to vector<16x1xi32>
    %36 = vector.broadcast %35 : vector<16x1xi32> to vector<16x256xi32>
    %37 = arith.cmpi eq, %36, %15 : vector<16x256xi32>
    %38 = vector.extract_strided_slice %10 {offsets = [0, 2], sizes = [16, 1], strides = [1, 1]} : vector<16x128xf32> to vector<16x1xf32>
    %cst_7 = arith.constant 0.000000e+00 : f32
    %39 = vector.shape_cast %38 : vector<16x1xf32> to vector<16x1xf32>
    %40 = vector.broadcast %39 : vector<16x1xf32> to vector<16x256xf32>
    %41 = vector.broadcast %cst_7 : f32 to vector<16x256xf32>
    %42 = arith.select %37, %40, %41 : vector<16x256xi1>, vector<16x256xf32>
    %43 = arith.addf %34, %42 : vector<16x256xf32>
    %44 = vector.extract_strided_slice %11 {offsets = [0, 3], sizes = [16, 1], strides = [1, 1]} : vector<16x128xi32> to vector<16x1xi32>
    %45 = vector.broadcast %44 : vector<16x1xi32> to vector<16x256xi32>
    %46 = arith.cmpi eq, %45, %15 : vector<16x256xi32>
    %47 = vector.extract_strided_slice %10 {offsets = [0, 3], sizes = [16, 1], strides = [1, 1]} : vector<16x128xf32> to vector<16x1xf32>
    %cst_8 = arith.constant 0.000000e+00 : f32
    %48 = vector.shape_cast %47 : vector<16x1xf32> to vector<16x1xf32>
    %49 = vector.broadcast %48 : vector<16x1xf32> to vector<16x256xf32>
    %50 = vector.broadcast %cst_8 : f32 to vector<16x256xf32>
    %51 = arith.select %46, %49, %50 : vector<16x256xi1>, vector<16x256xf32>
    %52 = arith.addf %43, %51 : vector<16x256xf32>
    %53 = vector.extract_strided_slice %11 {offsets = [0, 4], sizes = [16, 1], strides = [1, 1]} : vector<16x128xi32> to vector<16x1xi32>
    %54 = vector.broadcast %53 : vector<16x1xi32> to vector<16x256xi32>
    %55 = arith.cmpi eq, %54, %15 : vector<16x256xi32>
    %56 = vector.extract_strided_slice %10 {offsets = [0, 4], sizes = [16, 1], strides = [1, 1]} : vector<16x128xf32> to vector<16x1xf32>
    %cst_9 = arith.constant 0.000000e+00 : f32
    %57 = vector.shape_cast %56 : vector<16x1xf32> to vector<16x1xf32>
    %58 = vector.broadcast %57 : vector<16x1xf32> to vector<16x256xf32>
    %59 = vector.broadcast %cst_9 : f32 to vector<16x256xf32>
    %60 = arith.select %55, %58, %59 : vector<16x256xi1>, vector<16x256xf32>
    %61 = arith.addf %52, %60 : vector<16x256xf32>
    %62 = vector.extract_strided_slice %11 {offsets = [0, 5], sizes = [16, 1], strides = [1, 1]} : vector<16x128xi32> to vector<16x1xi32>
    %63 = vector.broadcast %62 : vector<16x1xi32> to vector<16x256xi32>
    %64 = arith.cmpi eq, %63, %15 : vector<16x256xi32>
    %65 = vector.extract_strided_slice %10 {offsets = [0, 5], sizes = [16, 1], strides = [1, 1]} : vector<16x128xf32> to vector<16x1xf32>
    %cst_10 = arith.constant 0.000000e+00 : f32
    %66 = vector.shape_cast %65 : vector<16x1xf32> to vector<16x1xf32>
    %67 = vector.broadcast %66 : vector<16x1xf32> to vector<16x256xf32>
    %68 = vector.broadcast %cst_10 : f32 to vector<16x256xf32>
    %69 = arith.select %64, %67, %68 : vector<16x256xi1>, vector<16x256xf32>
    %70 = arith.addf %61, %69 : vector<16x256xf32>
    %71 = vector.extract_strided_slice %11 {offsets = [0, 6], sizes = [16, 1], strides = [1, 1]} : vector<16x128xi32> to vector<16x1xi32>
    %72 = vector.broadcast %71 : vector<16x1xi32> to vector<16x256xi32>
    %73 = arith.cmpi eq, %72, %15 : vector<16x256xi32>
    %74 = vector.extract_strided_slice %10 {offsets = [0, 6], sizes = [16, 1], strides = [1, 1]} : vector<16x128xf32> to vector<16x1xf32>
    %cst_11 = arith.constant 0.000000e+00 : f32
    %75 = vector.shape_cast %74 : vector<16x1xf32> to vector<16x1xf32>
    %76 = vector.broadcast %75 : vector<16x1xf32> to vector<16x256xf32>
    %77 = vector.broadcast %cst_11 : f32 to vector<16x256xf32>
    %78 = arith.select %73, %76, %77 : vector<16x256xi1>, vector<16x256xf32>
    %79 = arith.addf %70, %78 : vector<16x256xf32>
    %80 = vector.extract_strided_slice %11 {offsets = [0, 7], sizes = [16, 1], strides = [1, 1]} : vector<16x128xi32> to vector<16x1xi32>
    %81 = vector.broadcast %80 : vector<16x1xi32> to vector<16x256xi32>
    %82 = arith.cmpi eq, %81, %15 : vector<16x256xi32>
    %83 = vector.extract_strided_slice %10 {offsets = [0, 7], sizes = [16, 1], strides = [1, 1]} : vector<16x128xf32> to vector<16x1xf32>
    %cst_12 = arith.constant 0.000000e+00 : f32
    %84 = vector.shape_cast %83 : vector<16x1xf32> to vector<16x1xf32>
    %85 = vector.broadcast %84 : vector<16x1xf32> to vector<16x256xf32>
    %86 = vector.broadcast %cst_12 : f32 to vector<16x256xf32>
    %87 = arith.select %82, %85, %86 : vector<16x256xi1>, vector<16x256xf32>
    %88 = arith.addf %79, %87 : vector<16x256xf32>
    %89 = vector.extract_strided_slice %11 {offsets = [0, 8], sizes = [16, 1], strides = [1, 1]} : vector<16x128xi32> to vector<16x1xi32>
    %90 = vector.broadcast %89 : vector<16x1xi32> to vector<16x256xi32>
    %91 = arith.cmpi eq, %90, %15 : vector<16x256xi32>
    %92 = vector.extract_strided_slice %10 {offsets = [0, 8], sizes = [16, 1], strides = [1, 1]} : vector<16x128xf32> to vector<16x1xf32>
    %cst_13 = arith.constant 0.000000e+00 : f32
    %93 = vector.shape_cast %92 : vector<16x1xf32> to vector<16x1xf32>
    %94 = vector.broadcast %93 : vector<16x1xf32> to vector<16x256xf32>
    %95 = vector.broadcast %cst_13 : f32 to vector<16x256xf32>
    %96 = arith.select %91, %94, %95 : vector<16x256xi1>, vector<16x256xf32>
    %97 = arith.addf %88, %96 : vector<16x256xf32>
    %98 = vector.extract_strided_slice %11 {offsets = [0, 9], sizes = [16, 1], strides = [1, 1]} : vector<16x128xi32> to vector<16x1xi32>
    %99 = vector.broadcast %98 : vector<16x1xi32> to vector<16x256xi32>
    %100 = arith.cmpi eq, %99, %15 : vector<16x256xi32>
    %101 = vector.extract_strided_slice %10 {offsets = [0, 9], sizes = [16, 1], strides = [1, 1]} : vector<16x128xf32> to vector<16x1xf32>
    %cst_14 = arith.constant 0.000000e+00 : f32
    %102 = vector.shape_cast %101 : vector<16x1xf32> to vector<16x1xf32>
    %103 = vector.broadcast %102 : vector<16x1xf32> to vector<16x256xf32>
    %104 = vector.broadcast %cst_14 : f32 to vector<16x256xf32>
    %105 = arith.select %100, %103, %104 : vector<16x256xi1>, vector<16x256xf32>
    %106 = arith.addf %97, %105 : vector<16x256xf32>
    %107 = vector.extract_strided_slice %11 {offsets = [0, 10], sizes = [16, 1], strides = [1, 1]} : vector<16x128xi32> to vector<16x1xi32>
    %108 = vector.broadcast %107 : vector<16x1xi32> to vector<16x256xi32>
    %109 = arith.cmpi eq, %108, %15 : vector<16x256xi32>
    %110 = vector.extract_strided_slice %10 {offsets = [0, 10], sizes = [16, 1], strides = [1, 1]} : vector<16x128xf32> to vector<16x1xf32>
    %cst_15 = arith.constant 0.000000e+00 : f32
    %111 = vector.shape_cast %110 : vector<16x1xf32> to vector<16x1xf32>
    %112 = vector.broadcast %111 : vector<16x1xf32> to vector<16x256xf32>
    %113 = vector.broadcast %cst_15 : f32 to vector<16x256xf32>
    %114 = arith.select %109, %112, %113 : vector<16x256xi1>, vector<16x256xf32>
    %115 = arith.addf %106, %114 : vector<16x256xf32>
    %116 = vector.extract_strided_slice %11 {offsets = [0, 11], sizes = [16, 1], strides = [1, 1]} : vector<16x128xi32> to vector<16x1xi32>
    %117 = vector.broadcast %116 : vector<16x1xi32> to vector<16x256xi32>
    %118 = arith.cmpi eq, %117, %15 : vector<16x256xi32>
    %119 = vector.extract_strided_slice %10 {offsets = [0, 11], sizes = [16, 1], strides = [1, 1]} : vector<16x128xf32> to vector<16x1xf32>
    %cst_16 = arith.constant 0.000000e+00 : f32
    %120 = vector.shape_cast %119 : vector<16x1xf32> to vector<16x1xf32>
    %121 = vector.broadcast %120 : vector<16x1xf32> to vector<16x256xf32>
    %122 = vector.broadcast %cst_16 : f32 to vector<16x256xf32>
    %123 = arith.select %118, %121, %122 : vector<16x256xi1>, vector<16x256xf32>
    %124 = arith.addf %115, %123 : vector<16x256xf32>
    %125 = vector.extract_strided_slice %11 {offsets = [0, 12], sizes = [16, 1], strides = [1, 1]} : vector<16x128xi32> to vector<16x1xi32>
    %126 = vector.broadcast %125 : vector<16x1xi32> to vector<16x256xi32>
    %127 = arith.cmpi eq, %126, %15 : vector<16x256xi32>
    %128 = vector.extract_strided_slice %10 {offsets = [0, 12], sizes = [16, 1], strides = [1, 1]} : vector<16x128xf32> to vector<16x1xf32>
    %cst_17 = arith.constant 0.000000e+00 : f32
    %129 = vector.shape_cast %128 : vector<16x1xf32> to vector<16x1xf32>
    %130 = vector.broadcast %129 : vector<16x1xf32> to vector<16x256xf32>
    %131 = vector.broadcast %cst_17 : f32 to vector<16x256xf32>
    %132 = arith.select %127, %130, %131 : vector<16x256xi1>, vector<16x256xf32>
    %133 = arith.addf %124, %132 : vector<16x256xf32>
    %134 = vector.extract_strided_slice %11 {offsets = [0, 13], sizes = [16, 1], strides = [1, 1]} : vector<16x128xi32> to vector<16x1xi32>
    %135 = vector.broadcast %134 : vector<16x1xi32> to vector<16x256xi32>
    %136 = arith.cmpi eq, %135, %15 : vector<16x256xi32>
    %137 = vector.extract_strided_slice %10 {offsets = [0, 13], sizes = [16, 1], strides = [1, 1]} : vector<16x128xf32> to vector<16x1xf32>
    %cst_18 = arith.constant 0.000000e+00 : f32
    %138 = vector.shape_cast %137 : vector<16x1xf32> to vector<16x1xf32>
    %139 = vector.broadcast %138 : vector<16x1xf32> to vector<16x256xf32>
    %140 = vector.broadcast %cst_18 : f32 to vector<16x256xf32>
    %141 = arith.select %136, %139, %140 : vector<16x256xi1>, vector<16x256xf32>
    %142 = arith.addf %133, %141 : vector<16x256xf32>
    %143 = vector.extract_strided_slice %11 {offsets = [0, 14], sizes = [16, 1], strides = [1, 1]} : vector<16x128xi32> to vector<16x1xi32>
    %144 = vector.broadcast %143 : vector<16x1xi32> to vector<16x256xi32>
    %145 = arith.cmpi eq, %144, %15 : vector<16x256xi32>
    %146 = vector.extract_strided_slice %10 {offsets = [0, 14], sizes = [16, 1], strides = [1, 1]} : vector<16x128xf32> to vector<16x1xf32>
    %cst_19 = arith.constant 0.000000e+00 : f32
    %147 = vector.shape_cast %146 : vector<16x1xf32> to vector<16x1xf32>
    %148 = vector.broadcast %147 : vector<16x1xf32> to vector<16x256xf32>
    %149 = vector.broadcast %cst_19 : f32 to vector<16x256xf32>
    %150 = arith.select %145, %148, %149 : vector<16x256xi1>, vector<16x256xf32>
    %151 = arith.addf %142, %150 : vector<16x256xf32>
    %152 = vector.extract_strided_slice %11 {offsets = [0, 15], sizes = [16, 1], strides = [1, 1]} : vector<16x128xi32> to vector<16x1xi32>
    %153 = vector.broadcast %152 : vector<16x1xi32> to vector<16x256xi32>
    %154 = arith.cmpi eq, %153, %15 : vector<16x256xi32>
    %155 = vector.extract_strided_slice %10 {offsets = [0, 15], sizes = [16, 1], strides = [1, 1]} : vector<16x128xf32> to vector<16x1xf32>
    %cst_20 = arith.constant 0.000000e+00 : f32
    %156 = vector.shape_cast %155 : vector<16x1xf32> to vector<16x1xf32>
    %157 = vector.broadcast %156 : vector<16x1xf32> to vector<16x256xf32>
    %158 = vector.broadcast %cst_20 : f32 to vector<16x256xf32>
    %159 = arith.select %154, %157, %158 : vector<16x256xi1>, vector<16x256xf32>
    %160 = arith.addf %151, %159 : vector<16x256xf32>
    %c0_21 = arith.constant 0 : index
    %c0_22 = arith.constant 0 : index
    %161 = vector.load %arg12[%c0_21, %c0_22] : memref<16x256xf32, #tpu.memory_space<vmem>>, vector<16x256xf32>
    %162 = arith.truncf %160 : vector<16x256xf32> to vector<16x256xbf16>
    %c0_23 = arith.constant 0 : index
    %c0_24 = arith.constant 0 : index
    %163 = vector.load %arg6[%c0_23, %c0_24] : memref<256x256xbf16, #tpu.memory_space<vmem>>, vector<256x256xbf16>
    %cst_25 = arith.constant dense<0.000000e+00> : vector<16x256xf32>
    %164 = tpu.matmul %162, %163, %cst_25 {dimension_numbers = #tpu.dot_dimension_numbers<[1], [0], [0], [1], [0, 0, 1, 1], [], []>} : vector<16x256xbf16>, vector<256x256xbf16>, vector<16x256xf32> -> vector<16x256xf32>
    %165 = arith.addf %161, %164 : vector<16x256xf32>
    %c0_26 = arith.constant 0 : index
    %c0_27 = arith.constant 0 : index
    %166 = vector.load %arg12[%c0_26, %c0_27] : memref<16x256xf32, #tpu.memory_space<vmem>>, vector<16x256xf32>
    tpu.vector_store %arg12[%c0_26, %c0_27], %165 {strides = array<i32>} : memref<16x256xf32, #tpu.memory_space<vmem>>, vector<16x256xf32>,
    %c0_28 = arith.constant 0 : index
    %c0_29 = arith.constant 0 : index
    %167 = vector.load %arg4[%c0_28, %c0_29] : memref<8x256xf32, #tpu.memory_space<vmem>>, vector<8x256xf32>
    %c0_30 = arith.constant 0 : index
    %c0_31 = arith.constant 0 : index
    %168 = vector.load %arg5[%c0_30, %c0_31] : memref<1x256xf32, #tpu.memory_space<vmem>>, vector<1x256xf32>
    %169 = vector.broadcast %168 : vector<1x256xf32> to vector<8x256xf32>
    %170 = arith.mulf %167, %169 : vector<8x256xf32>
    %171 = tpu.iota {dimensions = array<i32: 1>} : vector<8x128xi32>
    %c256_i32_32 = arith.constant 256 : i32
    %172 = arith.muli %arg1, %c256_i32_32 : i32
    %173 = tpu.iota {dimensions = array<i32: 1>} : vector<8x256xi32>
    %174 = vector.broadcast %172 : i32 to vector<8x256xi32>
    %175 = arith.addi %174, %173 : vector<8x256xi32>
    %c0_i32_33 = arith.constant 0 : i32
    %176 = arith.cmpi eq, %arg1, %c0_i32_33 : i32
    %177 = arith.extui %176 : i1 to i32
    %c1073741824_i32 = arith.constant 1073741824 : i32
    %c0_i32_34 = arith.constant 0 : i32
    %178 = arith.cmpi ne, %177, %c0_i32_34 : i32
    scf.if %178 {
      %cst_53 = arith.constant 0xFF800000 : f32
      %193 = vector.broadcast %cst_53 : f32 to vector<8x128xf32>
      %c0_54 = arith.constant 0 : index
      %c0_55 = arith.constant 0 : index
      %194 = vector.load %arg13[%c0_54, %c0_55] : memref<8x128xf32, #tpu.memory_space<vmem>>, vector<8x128xf32>
      tpu.vector_store %arg13[%c0_54, %c0_55], %193 {strides = array<i32>} : memref<8x128xf32, #tpu.memory_space<vmem>>, vector<8x128xf32>,
      %195 = vector.broadcast %c1073741824_i32 : i32 to vector<8x128xi32>
      %c0_56 = arith.constant 0 : index
      %c0_57 = arith.constant 0 : index
      %196 = vector.load %arg14[%c0_56, %c0_57] : memref<8x128xi32, #tpu.memory_space<vmem>>, vector<8x128xi32>
      tpu.vector_store %arg14[%c0_56, %c0_57], %195 {strides = array<i32>} : memref<8x128xi32, #tpu.memory_space<vmem>>, vector<8x128xi32>,
    } else {
    }
    %c0_35 = arith.constant 0 : index
    %c0_36 = arith.constant 0 : index
    %179 = vector.load %arg13[%c0_35, %c0_36] : memref<8x128xf32, #tpu.memory_space<vmem>>, vector<8x128xf32>
    %c0_37 = arith.constant 0 : index
    %c0_38 = arith.constant 0 : index
    %180 = vector.load %arg14[%c0_37, %c0_38] : memref<8x128xi32, #tpu.memory_space<vmem>>, vector<8x128xi32>
    %cst_39 = arith.constant 0xFF800000 : f32
    %181 = vector.broadcast %cst_39 : f32 to vector<8x128xf32>
    %c1073741824_i32_40 = arith.constant 1073741824 : i32
    %182 = vector.broadcast %c1073741824_i32_40 : i32 to vector<8x128xi32>
    %c1073741824_i32_41 = arith.constant 1073741824 : i32
    %cst_42 = arith.constant 0xFF800000 : f32
    %c0_i32_43 = arith.constant 0 : i32
    %c8_i32 = arith.constant 8 : i32
    %183 = arith.addi %c0_i32_43, %c8_i32 : i32
    %c1_i32 = arith.constant 1 : i32
    %184:4 = scf.for %arg15 = %c0_i32_43 to %183 step %c1_i32 iter_args(%arg16 = %170, %arg17 = %179, %arg18 = %181, %arg19 = %182) -> (vector<8x256xf32>, vector<8x128xf32>, vector<8x128xf32>, vector<8x128xi32>)  : i32 {
      %cst_53 = arith.constant dense<0xFF800000> : vector<8xf32>
      %193 = vector.multi_reduction <maximumf>, %arg16, %cst_53 [1] : vector<8x256xf32> to vector<8xf32>
      %194 = vector.shape_cast %193 : vector<8xf32> to vector<8x1xf32>
      %cst_54 = arith.constant dense<0xFF800000> : vector<8xf32>
      %195 = vector.multi_reduction <maximumf>, %arg17, %cst_54 [1] : vector<8x128xf32> to vector<8xf32>
      %196 = vector.shape_cast %195 : vector<8xf32> to vector<8x1xf32>
      %197 = arith.maximumf %194, %196 : vector<8x1xf32>
      %198 = vector.broadcast %197 : vector<8x1xf32> to vector<8x256xf32>
      %199 = arith.cmpf oeq, %arg16, %198 : vector<8x256xf32>
      %200 = vector.broadcast %c1073741824_i32_41 : i32 to vector<8x256xi32>
      %201 = arith.select %199, %175, %200 : vector<8x256xi1>, vector<8x256xi32>
      %cst_55 = arith.constant dense<2147483647> : vector<8xi32>
      %202 = vector.multi_reduction <minsi>, %201, %cst_55 [1] : vector<8x256xi32> to vector<8xi32>
      %203 = vector.shape_cast %202 : vector<8xi32> to vector<8x1xi32>
      %204 = vector.broadcast %197 : vector<8x1xf32> to vector<8x128xf32>
      %205 = arith.cmpf oeq, %arg17, %204 : vector<8x128xf32>
      %206 = vector.broadcast %c1073741824_i32_41 : i32 to vector<8x128xi32>
      %207 = arith.select %205, %180, %206 : vector<8x128xi1>, vector<8x128xi32>
      %cst_56 = arith.constant dense<2147483647> : vector<8xi32>
      %208 = vector.multi_reduction <minsi>, %207, %cst_56 [1] : vector<8x128xi32> to vector<8xi32>
      %209 = vector.shape_cast %208 : vector<8xi32> to vector<8x1xi32>
      %210 = arith.minsi %203, %209 : vector<8x1xi32>
      %211 = vector.broadcast %arg15 : i32 to vector<8x128xi32>
      %212 = arith.cmpi eq, %171, %211 : vector<8x128xi32>
      %213 = vector.shape_cast %197 : vector<8x1xf32> to vector<8x1xf32>
      %214 = vector.broadcast %213 : vector<8x1xf32> to vector<8x128xf32>
      %215 = arith.select %212, %214, %arg18 : vector<8x128xi1>, vector<8x128xf32>
      %216 = vector.broadcast %arg15 : i32 to vector<8x128xi32>
      %217 = arith.cmpi eq, %171, %216 : vector<8x128xi32>
      %218 = vector.shape_cast %210 : vector<8x1xi32> to vector<8x1xi32>
      %219 = vector.broadcast %218 : vector<8x1xi32> to vector<8x128xi32>
      %220 = arith.select %217, %219, %arg19 : vector<8x128xi1>, vector<8x128xi32>
      %221 = vector.broadcast %210 : vector<8x1xi32> to vector<8x256xi32>
      %222 = arith.cmpi eq, %175, %221 : vector<8x256xi32>
      %223 = vector.broadcast %cst_42 : f32 to vector<8x256xf32>
      %224 = arith.select %222, %223, %arg16 : vector<8x256xi1>, vector<8x256xf32>
      %225 = vector.broadcast %210 : vector<8x1xi32> to vector<8x128xi32>
      %226 = arith.cmpi eq, %180, %225 : vector<8x128xi32>
      %227 = vector.broadcast %cst_42 : f32 to vector<8x128xf32>
      %228 = arith.select %226, %227, %arg17 : vector<8x128xi1>, vector<8x128xf32>
      scf.yield %224, %228, %215, %220 : vector<8x256xf32>, vector<8x128xf32>, vector<8x128xf32>, vector<8x128xi32>
    }
    %c8_i32_44 = arith.constant 8 : i32
    %c0_45 = arith.constant 0 : index
    %c0_46 = arith.constant 0 : index
    %185 = vector.load %arg13[%c0_45, %c0_46] : memref<8x128xf32, #tpu.memory_space<vmem>>, vector<8x128xf32>
    tpu.vector_store %arg13[%c0_45, %c0_46], %184#2 {strides = array<i32>} : memref<8x128xf32, #tpu.memory_space<vmem>>, vector<8x128xf32>,
    %c0_47 = arith.constant 0 : index
    %c0_48 = arith.constant 0 : index
    %186 = vector.load %arg14[%c0_47, %c0_48] : memref<8x128xi32, #tpu.memory_space<vmem>>, vector<8x128xi32>
    tpu.vector_store %arg14[%c0_47, %c0_48], %184#3 {strides = array<i32>} : memref<8x128xi32, #tpu.memory_space<vmem>>, vector<8x128xi32>,
    %c1_i32_49 = arith.constant 1 : i32
    %187 = arith.cmpi eq, %arg1, %c1_i32_49 : i32
    %188 = arith.extui %187 : i1 to i32
    %c0_i32_50 = arith.constant 0 : i32
    %189 = arith.cmpi ne, %188, %c0_i32_50 : i32
    scf.if %189 {
      %cst_53 = arith.constant 0.000000e+00 : f32
      %193 = vector.broadcast %cst_53 : f32 to vector<8x128xf32>
      %194 = arith.maximumf %184#2, %193 : vector<8x128xf32>
      %c0_54 = arith.constant 0 : index
      %c0_55 = arith.constant 0 : index
      %195 = vector.load %arg10[%c0_54, %c0_55] : memref<8x128xf32, #tpu.memory_space<vmem>>, vector<8x128xf32>
      tpu.vector_store %arg10[%c0_54, %c0_55], %194 {strides = array<i32>} : memref<8x128xf32, #tpu.memory_space<vmem>>, vector<8x128xf32>,
      %c8_i32_56 = arith.constant 8 : i32
      %196 = vector.broadcast %c8_i32_56 : i32 to vector<8x128xi32>
      %197 = arith.cmpi slt, %171, %196 : vector<8x128xi32>
      %c0_i32_57 = arith.constant 0 : i32
      %198 = vector.broadcast %c0_i32_57 : i32 to vector<8x128xi32>
      %199 = arith.select %197, %184#3, %198 : vector<8x128xi1>, vector<8x128xi32>
      %c0_58 = arith.constant 0 : index
      %c0_59 = arith.constant 0 : index
      %200 = vector.load %arg11[%c0_58, %c0_59] : memref<8x128xi32, #tpu.memory_space<vmem>>, vector<8x128xi32>
      tpu.vector_store %arg11[%c0_58, %c0_59], %199 {strides = array<i32>} : memref<8x128xi32, #tpu.memory_space<vmem>>, vector<8x128xi32>,
    } else {
    }
    %c1_i32_51 = arith.constant 1 : i32
    %190 = arith.cmpi eq, %arg1, %c1_i32_51 : i32
    %191 = arith.extui %190 : i1 to i32
    %c0_i32_52 = arith.constant 0 : i32
    %192 = arith.cmpi ne, %191, %c0_i32_52 : i32
    scf.if %192 {
      %c0_53 = arith.constant 0 : index
      %c0_54 = arith.constant 0 : index
      %193 = vector.load %arg12[%c0_53, %c0_54] : memref<16x256xf32, #tpu.memory_space<vmem>>, vector<16x256xf32>
      %c0_55 = arith.constant 0 : index
      %c0_56 = arith.constant 0 : index
      %194 = vector.load %arg7[%c0_55, %c0_56] : memref<1x256xf32, #tpu.memory_space<vmem>>, vector<1x256xf32>
      %195 = vector.broadcast %194 : vector<1x256xf32> to vector<16x256xf32>
      %196 = arith.addf %193, %195 : vector<16x256xf32>
      %197 = vector.extract_strided_slice %196 {offsets = [0, 0], sizes = [8, 256], strides = [1, 1]} : vector<16x256xf32> to vector<8x256xf32>
      %c0_57 = arith.constant 0 : index
      %c0_58 = arith.constant 0 : index
      %198 = vector.load %arg8[%c0_57, %c0_58] : memref<8x256xf32, #tpu.memory_space<vmem>>, vector<8x256xf32>
      tpu.vector_store %arg8[%c0_57, %c0_58], %197 {strides = array<i32>} : memref<8x256xf32, #tpu.memory_space<vmem>>, vector<8x256xf32>,
      %199 = vector.extract_strided_slice %196 {offsets = [8, 0], sizes = [8, 256], strides = [1, 1]} : vector<16x256xf32> to vector<8x256xf32>
      %c0_59 = arith.constant 0 : index
      %c0_60 = arith.constant 0 : index
      %200 = vector.load %arg9[%c0_59, %c0_60] : memref<8x256xf32, #tpu.memory_space<vmem>>, vector<8x256xf32>
      tpu.vector_store %arg9[%c0_59, %c0_60], %199 {strides = array<i32>} : memref<8x256xf32, #tpu.memory_space<vmem>>, vector<8x256xf32>,
    } else {
    }
    return
  }
  func.func @transform_0(%arg0: i32, %arg1: i32) -> (i32, i32) {
    %c0_i32 = arith.constant 0 : i32
    %c0_i32_0 = arith.constant 0 : i32
    return %arg0, %c0_i32 : i32, i32
  }
  func.func @transform_1(%arg0: i32, %arg1: i32) -> (i32, i32) {
    %c0_i32 = arith.constant 0 : i32
    %c0_i32_0 = arith.constant 0 : i32
    return %arg0, %c0_i32 : i32, i32
  }
  func.func @transform_2(%arg0: i32, %arg1: i32) -> (i32, i32) {
    %c0_i32 = arith.constant 0 : i32
    return %arg0, %arg1 : i32, i32
  }
  func.func @transform_3(%arg0: i32, %arg1: i32) -> (i32, i32) {
    %c0_i32 = arith.constant 0 : i32
    %c0_i32_0 = arith.constant 0 : i32
    return %c0_i32, %arg1 : i32, i32
  }
  func.func @transform_4(%arg0: i32, %arg1: i32) -> (i32, i32) {
    %c0_i32 = arith.constant 0 : i32
    %c0_i32_0 = arith.constant 0 : i32
    return %arg1, %c0_i32 : i32, i32
  }
  func.func @transform_5(%arg0: i32, %arg1: i32) -> (i32, i32) {
    %c0_i32 = arith.constant 0 : i32
    %c0_i32_0 = arith.constant 0 : i32
    %c0_i32_1 = arith.constant 0 : i32
    return %c0_i32, %c0_i32_0 : i32, i32
  }
  func.func @transform_6(%arg0: i32, %arg1: i32) -> (i32, i32) {
    %c0_i32 = arith.constant 0 : i32
    %c0_i32_0 = arith.constant 0 : i32
    return %arg0, %c0_i32 : i32, i32
  }
  func.func @transform_7(%arg0: i32, %arg1: i32) -> (i32, i32) {
    %c0_i32 = arith.constant 0 : i32
    %c0_i32_0 = arith.constant 0 : i32
    return %arg0, %c0_i32 : i32, i32
  }
  func.func @transform_8(%arg0: i32, %arg1: i32) -> (i32, i32) {
    %c0_i32 = arith.constant 0 : i32
    %c0_i32_0 = arith.constant 0 : i32
    return %arg0, %c0_i32 : i32, i32
  }
  func.func @transform_9(%arg0: i32, %arg1: i32) -> (i32, i32) {
    %c0_i32 = arith.constant 0 : i32
    %c0_i32_0 = arith.constant 0 : i32
    return %arg0, %c0_i32 : i32, i32
  }
}

</mosaic_0001>

<llo_original>
// kernel: fast_autoencoder_forward.2
$region0: #{fast_autoencoder_forward.2}
  #allocation0 [shape = 'u32[]', space=smem, size = 0x4, offset = 0x4, fixed_abs, tag = 'smem constant byte address 0x4 - core index']
  #allocation1 [shape = 'u32[144,128]{1,0:T(1,128)}', space=vmem, size = 0x12000, scoped, tag = 'internal scratch']
  #allocation2 [shape = 'f32[8,128]{1,0:T(8,128)}', space=vmem, size = 0x1000, scoped, tag = 'scratch operand']
  #allocation3 [shape = 's32[8,128]{1,0:T(8,128)}', space=vmem, size = 0x1000, scoped, tag = 'scratch operand']
  %s0 = inlined_call_operand.vmem [shape: bf16[16,256], index: 0, kind: input, shape index: {}]
  %s1 = inlined_call_operand.hbm [shape: bf16[256,512], index: 1, kind: input, shape index: {}]
  %s2 = inlined_call_operand.vmem [shape: f32[1,512], index: 2, kind: input, shape index: {}]
  %s3 = inlined_call_operand.vmem [shape: f32[16,512], index: 3, kind: output, shape index: {0}]
  %s4 = inlined_call_operand.vmem [shape: f32[16,128], index: 4, kind: output, shape index: {1}]
  %s5 = inlined_call_operand.vmem [shape: s32[16,128], index: 5, kind: output, shape index: {2}]
  %6 = xla_tuple %s3, %s4, %s5
  %s7 = sld [smem:[#allocation0]]
  $region80: #{fast_autoencoder_forward.2} parent=0
    _
  %s9 = ssub.s32 1, %s7
  %s10 = scalar_select 0, %s9, %s7
  $region1: #{fast_autoencoder_forward.2} parent=0
    #allocation4 [shape = 'u8[262144]{0}', space=vmem, size = 0x40000, scoped, tag = 'input window, operand 1']
    #allocation5 [shape = 's32[2]{0}', space=sflag, size = 0x8, scoped, tag = 'scoped memory for fast_autoencoder_forward.2']
    %11 = vsyncpa [#allocation5], 0
    %s12 = scalar_lea.sflag [#allocation5], 1
    %13 = vsyncpa %s12, 0
    loop: start=0, step=1, limit=6
    $region2: #{fast_autoencoder_forward.2} parent=1 // loop_pre_header
      _
    $region3: #{fast_autoencoder_forward.2} parent=1 // loop_header
      %s15 = sphi 0, %s19
      %p16 = scmp.ge.s32.totalorder %s15, 6
      %s22 = sphi 0, %s34
      %s23 = sphi 0, %s30
      %s24 = sphi 0, %s22
      %s25 = sphi 0, %s23
      %s26 = sphi 0, %s24
      %s27 = sphi 0, %s25
      %s37 = sphi 0, %s39
      %s40 = sphi 0, %s37
      %s41 = sphi 0, %s40
      %s57 = sphi 0, %s41
      %s63 = sphi 0, %s65
      %s66 = sphi 0, %s63
      %s67 = sphi 0, %s66
      %s83 = sphi 0, %s67
      %s89 = sphi 0, %s91
      %s92 = sphi 0, %s89
      %s93 = sphi 0, %s92
      %s109 = sphi 0, %s93
      %s117 = sphi 0, %s119
      %s120 = sphi 0, %s117
      %s121 = sphi 0, %s120
      %s137 = sphi 0, %s121
      %s143 = sphi 0, %s145
      %s146 = sphi 0, %s143
      %s147 = sphi 0, %s146
      %s163 = sphi 0, %s147
      %s169 = sphi 0, %s171
      %s172 = sphi 0, %s169
      %s173 = sphi 0, %s172
      %s189 = sphi 0, %s173
    $region4: #{fast_autoencoder_forward.2} parent=1 // loop_header_branch
      %18 = sbr.rel (%p16) target = $region8
    $region5: #{fast_autoencoder_forward.2} parent=1 // loop_body
      %s20 = ssub.s32 %s15, 1
      %s21 = ssub.s32 %s15, 2
      %s28 = sadd.s32 1, %s23
      %p29 = scmp.ge.s32.totalorder %s28, 2
      %s30 = scalar_select %p29, 0, %s28
      %s31 = sadd.s32 1, %s22
      %s32 = scalar_select %p29, %s31, %s22
      %p33 = scmp.ge.s32.totalorder %s32, 2
      %s34 = scalar_select %p33, 0, %s32
      %s35 = ssub.s32 %s22, %s34
      %p36 = scmp.eq.s32.totalorder %s35, 0
      %s38 = sadd.s32 %s37, 1
      %s39 = scalar_select %p36, %s37, %s38
      %p42 = pneg %p36
      %p43 = scmp.eq.s32.totalorder %s15, 3
      %p44 = por %p42, %p43
      %p45 = scmp.ne.s32.totalorder %s37, %s40
      %p46 = scmp.eq.s32.totalorder %s15, 0
      %p47 = por %p45, %p46
      %p48 = scmp.ne.s32.totalorder %s37, %s40
      %p49 = scmp.eq.s32.totalorder %s20, 3
      %p50 = por %p48, %p49
      %p51 = scmp.ne.s32.totalorder %s40, %s41
      %p52 = scmp.eq.s32.totalorder %s20, 0
      %p53 = por %p51, %p52
      %p54 = scmp.ne.s32.totalorder %s40, %s41
      %p55 = scmp.eq.s32.totalorder %s21, 3
      %p56 = por %p54, %p55
      %p58 = scmp.ne.s32.totalorder %s41, %s57
      %p59 = scmp.eq.s32.totalorder %s21, 0
      %p60 = por %p58, %p59
      %s61 = ssub.s32 %s23, %s30
      %p62 = scmp.eq.s32.totalorder %s61, 0
      %s64 = sadd.s32 %s63, 1
      %s65 = scalar_select %p62, %s63, %s64
      %p68 = pneg %p62
      %p69 = scmp.eq.s32.totalorder %s15, 3
      %p70 = por %p68, %p69
      %p71 = scmp.ne.s32.totalorder %s63, %s66
      %p72 = scmp.eq.s32.totalorder %s15, 0
      %p73 = por %p71, %p72
      %p74 = scmp.ne.s32.totalorder %s63, %s66
      %p75 = scmp.eq.s32.totalorder %s20, 3
      %p76 = por %p74, %p75
      %p77 = scmp.ne.s32.totalorder %s66, %s67
      %p78 = scmp.eq.s32.totalorder %s20, 0
      %p79 = por %p77, %p78
      %p80 = scmp.ne.s32.totalorder %s66, %s67
      %p81 = scmp.eq.s32.totalorder %s21, 3
      %p82 = por %p80, %p81
      %p84 = scmp.ne.s32.totalorder %s67, %s83
      %p85 = scmp.eq.s32.totalorder %s21, 0
      %p86 = por %p84, %p85
      %s87 = ssub.s32 %s23, %s30
      %p88 = scmp.eq.s32.totalorder %s87, 0
      %s90 = sadd.s32 %s89, 1
      %s91 = scalar_select %p88, %s89, %s90
      %p94 = pneg %p88
      %p95 = scmp.eq.s32.totalorder %s15, 3
      %p96 = por %p94, %p95
      %p97 = scmp.ne.s32.totalorder %s89, %s92
      %p98 = scmp.eq.s32.totalorder %s15, 0
      %p99 = por %p97, %p98
      %p100 = scmp.ne.s32.totalorder %s89, %s92
      %p101 = scmp.eq.s32.totalorder %s20, 3
      %p102 = por %p100, %p101
      %p103 = scmp.ne.s32.totalorder %s92, %s93
      %p104 = scmp.eq.s32.totalorder %s20, 0
      %p105 = por %p103, %p104
      %p106 = scmp.ne.s32.totalorder %s92, %s93
      %p107 = scmp.eq.s32.totalorder %s21, 3
      %p108 = por %p106, %p107
      %p110 = scmp.ne.s32.totalorder %s93, %s109
      %p111 = scmp.eq.s32.totalorder %s21, 0
      %p112 = por %p110, %p111
      %s113 = ssub.s32 %s22, %s34
      %s114 = ssub.s32 %s23, %s30
      %s115 = sor.u32 %s113, %s114
      %p116 = scmp.eq.s32.totalorder %s115, 0
      %s118 = sadd.s32 %s117, 1
      %s119 = scalar_select %p116, %s117, %s118
      %p122 = pneg %p116
      %p123 = scmp.eq.s32.totalorder %s15, 3
      %p124 = por %p122, %p123
      %p125 = scmp.ne.s32.totalorder %s117, %s120
      %p126 = scmp.eq.s32.totalorder %s15, 0
      %p127 = por %p125, %p126
      %p128 = scmp.ne.s32.totalorder %s117, %s120
      %p129 = scmp.eq.s32.totalorder %s20, 3
      %p130 = por %p128, %p129
      %p131 = scmp.ne.s32.totalorder %s120, %s121
      %p132 = scmp.eq.s32.totalorder %s20, 0
      %p133 = por %p131, %p132
      %p134 = scmp.ne.s32.totalorder %s120, %s121
      %p135 = scmp.eq.s32.totalorder %s21, 3
      %p136 = por %p134, %p135
      %p138 = scmp.ne.s32.totalorder %s121, %s137
      %p139 = scmp.eq.s32.totalorder %s21, 0
      %p140 = por %p138, %p139
      %s141 = ssub.s32 %s22, %s34
      %p142 = scmp.eq.s32.totalorder %s141, 0
      %s144 = sadd.s32 %s143, 1
      %s145 = scalar_select %p142, %s143, %s144
      %p148 = pneg %p142
      %p149 = scmp.eq.s32.totalorder %s15, 3
      %p150 = por %p148, %p149
      %p151 = scmp.ne.s32.totalorder %s143, %s146
      %p152 = scmp.eq.s32.totalorder %s15, 0
      %p153 = por %p151, %p152
      %p154 = scmp.ne.s32.totalorder %s143, %s146
      %p155 = scmp.eq.s32.totalorder %s20, 3
      %p156 = por %p154, %p155
      %p157 = scmp.ne.s32.totalorder %s146, %s147
      %p158 = scmp.eq.s32.totalorder %s20, 0
      %p159 = por %p157, %p158
      %p160 = scmp.ne.s32.totalorder %s146, %s147
      %p161 = scmp.eq.s32.totalorder %s21, 3
      %p162 = por %p160, %p161
      %p164 = scmp.ne.s32.totalorder %s147, %s163
      %p165 = scmp.eq.s32.totalorder %s21, 0
      %p166 = por %p164, %p165
      %s167 = ssub.s32 %s22, %s34
      %p168 = scmp.eq.s32.totalorder %s167, 0
      %s170 = sadd.s32 %s169, 1
      %s171 = scalar_select %p168, %s169, %s170
      %p174 = pneg %p168
      %p175 = scmp.eq.s32.totalorder %s15, 3
      %p176 = por %p174, %p175
      %p177 = scmp.ne.s32.totalorder %s169, %s172
      %p178 = scmp.eq.s32.totalorder %s15, 0
      %p179 = por %p177, %p178
      %p180 = scmp.ne.s32.totalorder %s169, %s172
      %p181 = scmp.eq.s32.totalorder %s20, 3
      %p182 = por %p180, %p181
      %p183 = scmp.ne.s32.totalorder %s172, %s173
      %p184 = scmp.eq.s32.totalorder %s20, 0
      %p185 = por %p183, %p184
      %p186 = scmp.ne.s32.totalorder %s172, %s173
      %p187 = scmp.eq.s32.totalorder %s21, 3
      %p188 = por %p186, %p187
      %p190 = scmp.ne.s32.totalorder %s173, %s189
      %p191 = scmp.eq.s32.totalorder %s21, 0
      %p192 = por %p190, %p191
      %p193 = scmp.le.s32.totalorder 1, %s15
      %p194 = scmp.lt.s32.totalorder %s15, 5
      %p195 = pnand %p193, %p194
      %p196 = pneg %p195
      // Predicated region
      $region9: #{fast_autoencoder_forward.2} parent=5 // pred_check
        _
      $region10: #{fast_autoencoder_forward.2} parent=5 // pred_check_branch
        %198 = sbr.rel (%p195) target = $region12
      $region11: #{fast_autoencoder_forward.2} parent=5 // pred_region
        %s199 = ssub.s32 %s15, 1
      $region12: #{fast_autoencoder_forward.2} parent=5 // pred_fallthru
        _
      %p200 = scmp.lt.s32.totalorder %s15, 4
      // Predicated region
      $region13: #{fast_autoencoder_forward.2} parent=5 // pred_check
        %p201 = pneg %p200
      $region14: #{fast_autoencoder_forward.2} parent=5 // pred_check_branch
        %203 = sbr.rel (%p201) target = $region16
      $region15: #{fast_autoencoder_forward.2} parent=5 // pred_region
        // Predicated region
        $region17: #{fast_autoencoder_forward.2} parent=15 // pred_check
          %p204 = pneg %p47
        $region18: #{fast_autoencoder_forward.2} parent=15 // pred_check_branch
          %206 = sbr.rel (%p204) target = $region20
        $region19: #{fast_autoencoder_forward.2} parent=15 // pred_region
          %p207 = scmp.lt.s32.totalorder %s22, 1
          %s208 = scalar_select %p207, %s22, 1
          %s209 = smul.addr %s208, 2
          %s210 = smul.addr %s209, 4
          %s211 = scalar_lea.vmem %s0, %s210
        $region20: #{fast_autoencoder_forward.2} parent=15 // pred_fallthru
          _
        // Predicated region
        $region21: #{fast_autoencoder_forward.2} parent=15 // pred_check
          %p212 = pneg %p73
        $region22: #{fast_autoencoder_forward.2} parent=15 // pred_check_branch
          %214 = sbr.rel (%p212) target = $region24
        $region23: #{fast_autoencoder_forward.2} parent=15 // pred_region
          %s215 = sand.u32 %s63, 1
          %s216 = scalar_lea.sflag [#allocation5], %s215
          %s217 = sand.u32 %s63, 1
          %s218 = smul.addr %s217, 256
          %s219 = scalar_lea.vmem [#allocation4], %s218
          %s220 = smul.u32 2, %s23
          %s222 = ssub.s32 4096, 4096
          %223 = vsyncadd %s216, %s222
          %s224 = smul.addr %s220, 64
          %s225 = scalar_lea.hbm %s1, %s224
          %s226 = sshll.u32 %s219, 4
          %s227 = int_to_ptr.vmem [resolvable:$true] %s226
          %232 = dma.hbm_to_vmem [thread:$0]  %s225, 4096, %s227, %s216, 256, 128, 8
        $region24: #{fast_autoencoder_forward.2} parent=15 // pred_fallthru
          _
        // Predicated region
        $region25: #{fast_autoencoder_forward.2} parent=15 // pred_check
          %p233 = pneg %p99
        $region26: #{fast_autoencoder_forward.2} parent=15 // pred_check_branch
          %235 = sbr.rel (%p233) target = $region28
        $region27: #{fast_autoencoder_forward.2} parent=15 // pred_region
          %s236 = smul.u32 2, %s23
          %p237 = scmp.lt.s32.totalorder %s236, 3
          %s238 = scalar_select %p237, %s236, 3
          %s239 = scalar_lea.vmem %s2, %s238
          %s240 = smul.u32 2, %s23
        $region28: #{fast_autoencoder_forward.2} parent=15 // pred_fallthru
          _
      $region16: #{fast_autoencoder_forward.2} parent=5 // pred_fallthru
        _
      %p241 = scmp.le.s32.totalorder 1, %s15
      %p242 = scmp.lt.s32.totalorder %s15, 5
      %p243 = pnand %p241, %p242
      %p244 = pneg %p243
      // Predicated region
      $region29: #{fast_autoencoder_forward.2} parent=5 // pred_check
        _
      $region30: #{fast_autoencoder_forward.2} parent=5 // pred_check_branch
        %246 = sbr.rel (%p243) target = $region32
      $region31: #{fast_autoencoder_forward.2} parent=5 // pred_region
        %s247 = ssub.s32 %s15, 1
        %s248 = sand.u32 %s66, 1
        %s249 = scalar_lea.sflag [#allocation5], %s248
        %s250 = sand.u32 %s66, 1
        %s251 = smul.addr %s250, 256
        %s252 = scalar_lea.vmem [#allocation4], %s251
        // Predicated region
        $region33: #{fast_autoencoder_forward.2} parent=31 // pred_check
          %p253 = pneg %p79
        $region34: #{fast_autoencoder_forward.2} parent=31 // pred_check_branch
          %255 = sbr.rel (%p253) target = $region36
        $region35: #{fast_autoencoder_forward.2} parent=31 // pred_region
          %256 = dma.done %s249, 4096
        $region36: #{fast_autoencoder_forward.2} parent=31 // pred_fallthru
          _
        %p257 = scmp.lt.s32.totalorder %s24, 1
        %s258 = scalar_select %p257, %s24, 1
        %s259 = smul.addr %s258, 2
        %s260 = smul.addr %s259, 4
        %s261 = scalar_lea.vmem %s0, %s260
        %p262 = pneg %p53
        %p263 = pneg %p50
        %s264 = sand.u32 %s66, 1
        %s265 = scalar_lea.sflag [#allocation5], %s264
        %s266 = sand.u32 %s66, 1
        %s267 = smul.addr %s266, 256
        %s268 = scalar_lea.vmem [#allocation4], %s267
        %p269 = pneg %p79
        %p270 = pneg %p76
        %s271 = smul.u32 2, %s25
        %p272 = scmp.lt.s32.totalorder %s271, 3
        %s273 = scalar_select %p272, %s271, 3
        %s274 = scalar_lea.vmem %s2, %s273
        %p275 = pneg %p105
        %p276 = pneg %p102
        %p277 = pneg %p133
        %p278 = pneg %p130
        %s279 = smul.u32 2, %s25
        %p280 = scmp.lt.s32.totalorder %s24, 1
        %s281 = scalar_select %p280, %s24, 1
        %p282 = scmp.lt.s32.totalorder %s279, 3
        %s283 = scalar_select %p282, %s279, 3
        %s284 = smul.addr %s281, 4
        %s285 = sadd.s32 %s283, %s284
        %s286 = smul.addr %s285, 8
        %s287 = scalar_lea.vmem %s3, %s286
        %p288 = pneg %p159
        %p289 = pneg %p156
        %p290 = scmp.lt.s32.totalorder %s24, 1
        %s291 = scalar_select %p290, %s24, 1
        %s292 = smul.addr %s291, 8
        %s293 = scalar_lea.vmem %s4, %s292
        %p294 = pneg %p185
        %p295 = pneg %p182
        %p296 = scmp.lt.s32.totalorder %s24, 1
        %s297 = scalar_select %p296, %s24, 1
        %s298 = smul.addr %s297, 8
        %s299 = scalar_lea.vmem %s5, %s298
        %p300 = scmp.lt.s32.totalorder %s24, 1
        %s301 = scalar_select %p300, %s24, 1
        %s302 = smul.addr %s301, 2
        %s303 = smul.addr %s302, 4
        %s304 = scalar_lea.vmem %s0, %s303
        %s305 = smul.u32 2, %s25
        %s306 = smul.u32 2, %s25
        %p307 = scmp.lt.s32.totalorder %s306, 3
        %s308 = scalar_select %p307, %s306, 3
        %s309 = scalar_lea.vmem %s2, %s308
        %s310 = smul.u32 2, %s25
        %s311 = smul.u32 2, %s25
        %p312 = scmp.lt.s32.totalorder %s24, 1
        %s313 = scalar_select %p312, %s24, 1
        %p314 = scmp.lt.s32.totalorder %s311, 3
        %s315 = scalar_select %p314, %s311, 3
        %s316 = smul.addr %s313, 4
        %s317 = sadd.s32 %s315, %s316
        %s318 = smul.addr %s317, 8
        %s319 = scalar_lea.vmem %s3, %s318
        %s320 = smul.u32 2, %s25
        %p321 = scmp.lt.s32.totalorder %s24, 1
        %s322 = scalar_select %p321, %s24, 1
        %s323 = smul.addr %s322, 8
        %s324 = scalar_lea.vmem %s4, %s323
        %p325 = scmp.lt.s32.totalorder %s24, 1
        %s326 = scalar_select %p325, %s24, 1
        %s327 = smul.addr %s326, 8
        %s328 = scalar_lea.vmem %s5, %s327
        %v329 = vld [vmem:[%s304] sm:$0xff]
        %v330 = vld [vmem:[%s252] sm:$0xff]
        %v331 = vld [vmem:[%s252 + $0x8] sm:$0xff]
        %v332 = vld [vmem:[%s252 + $0x10] sm:$0xff]
        %v333 = vld [vmem:[%s252 + $0x18] sm:$0xff]
        %v334 = vld [vmem:[%s252 + $0x20] sm:$0xff]
        %v335 = vld [vmem:[%s252 + $0x28] sm:$0xff]
        %v336 = vld [vmem:[%s252 + $0x30] sm:$0xff]
        %v337 = vld [vmem:[%s252 + $0x38] sm:$0xff]
        %v338 = vld [vmem:[%s252 + $0x40] sm:$0xff]
        %v339 = vld [vmem:[%s252 + $0x48] sm:$0xff]
        %v340 = vld [vmem:[%s252 + $0x50] sm:$0xff]
        %v341 = vld [vmem:[%s252 + $0x58] sm:$0xff]
        %v342 = vld [vmem:[%s252 + $0x60] sm:$0xff]
        %v343 = vld [vmem:[%s252 + $0x68] sm:$0xff]
        %v344 = vld [vmem:[%s252 + $0x70] sm:$0xff]
        %v345 = vld [vmem:[%s252 + $0x78] sm:$0xff]
        %v346 = vld [vmem:[%s252 + $0x80] sm:$0xff]
        %v347 = vld [vmem:[%s252 + $0x88] sm:$0xff]
        %v348 = vld [vmem:[%s252 + $0x90] sm:$0xff]
        %v349 = vld [vmem:[%s252 + $0x98] sm:$0xff]
        %v350 = vld [vmem:[%s252 + $0xa0] sm:$0xff]
        %v351 = vld [vmem:[%s252 + $0xa8] sm:$0xff]
        %v352 = vld [vmem:[%s252 + $0xb0] sm:$0xff]
        %v353 = vld [vmem:[%s252 + $0xb8] sm:$0xff]
        %v354 = vld [vmem:[%s252 + $0xc0] sm:$0xff]
        %v355 = vld [vmem:[%s252 + $0xc8] sm:$0xff]
        %v356 = vld [vmem:[%s252 + $0xd0] sm:$0xff]
        %v357 = vld [vmem:[%s252 + $0xd8] sm:$0xff]
        %v358 = vld [vmem:[%s252 + $0xe0] sm:$0xff]
        %v359 = vld [vmem:[%s252 + $0xe8] sm:$0xff]
        %v360 = vld [vmem:[%s252 + $0xf0] sm:$0xff]
        %v361 = vld [vmem:[%s252 + $0xf8] sm:$0xff]
        %v362 = vld [vmem:[%s309] sm:$0x3]
        %v364 = vlaneseq
        %v365 = vshrl.u32 %v364, 7
        %v366 = vsub.s32 0, %v365
        %v367 = vrot.slane %v362, %v366
        %v368 = vlaneseq
        %v369 = vshrl.u32 %v368, 7
        %v370 = vsub.s32 1, %v369
        %v371 = vrot.slane %v362, %v370
        %v375 = vunpack.c.l.b16 %v329
        %v376 = vunpack.c.h.b16 %v329
        %v377 = vpack.c.b16 %v375, %v375
        %v378 = vpack.c.b16 %v376, %v376
        %v413 = vunpack.c.l.b16 %v330
        %v414 = vunpack.c.h.b16 %v330
        %v415 = vunpack.c.l.b16 %v331
        %v416 = vunpack.c.h.b16 %v331
        %v417 = vunpack.c.l.b16 %v332
        %v418 = vunpack.c.h.b16 %v332
        %v419 = vunpack.c.l.b16 %v333
        %v420 = vunpack.c.h.b16 %v333
        %v421 = vunpack.c.l.b16 %v334
        %v422 = vunpack.c.h.b16 %v334
        %v423 = vunpack.c.l.b16 %v335
        %v424 = vunpack.c.h.b16 %v335
        %v425 = vunpack.c.l.b16 %v336
        %v426 = vunpack.c.h.b16 %v336
        %v427 = vunpack.c.l.b16 %v337
        %v428 = vunpack.c.h.b16 %v337
        %v429 = vunpack.c.l.b16 %v338
        %v430 = vunpack.c.h.b16 %v338
        %v431 = vunpack.c.l.b16 %v339
        %v432 = vunpack.c.h.b16 %v339
        %v433 = vunpack.c.l.b16 %v340
        %v434 = vunpack.c.h.b16 %v340
        %v435 = vunpack.c.l.b16 %v341
        %v436 = vunpack.c.h.b16 %v341
        %v437 = vunpack.c.l.b16 %v342
        %v438 = vunpack.c.h.b16 %v342
        %v439 = vunpack.c.l.b16 %v343
        %v440 = vunpack.c.h.b16 %v343
        %v441 = vunpack.c.l.b16 %v344
        %v442 = vunpack.c.h.b16 %v344
        %v443 = vunpack.c.l.b16 %v345
        %v444 = vunpack.c.h.b16 %v345
        %v445 = vunpack.c.l.b16 %v346
        %v446 = vunpack.c.h.b16 %v346
        %v447 = vunpack.c.l.b16 %v347
        %v448 = vunpack.c.h.b16 %v347
        %v449 = vunpack.c.l.b16 %v348
        %v450 = vunpack.c.h.b16 %v348
        %v451 = vunpack.c.l.b16 %v349
        %v452 = vunpack.c.h.b16 %v349
        %v453 = vunpack.c.l.b16 %v350
        %v454 = vunpack.c.h.b16 %v350
        %v455 = vunpack.c.l.b16 %v351
        %v456 = vunpack.c.h.b16 %v351
        %v457 = vunpack.c.l.b16 %v352
        %v458 = vunpack.c.h.b16 %v352
        %v459 = vunpack.c.l.b16 %v353
        %v460 = vunpack.c.h.b16 %v353
        %v461 = vunpack.c.l.b16 %v354
        %v462 = vunpack.c.h.b16 %v354
        %v463 = vunpack.c.l.b16 %v355
        %v464 = vunpack.c.h.b16 %v355
        %v465 = vunpack.c.l.b16 %v356
        %v466 = vunpack.c.h.b16 %v356
        %v467 = vunpack.c.l.b16 %v357
        %v468 = vunpack.c.h.b16 %v357
        %v469 = vunpack.c.l.b16 %v358
        %v470 = vunpack.c.h.b16 %v358
        %v471 = vunpack.c.l.b16 %v359
        %v472 = vunpack.c.h.b16 %v359
        %v473 = vunpack.c.l.b16 %v360
        %v474 = vunpack.c.h.b16 %v360
        %v475 = vunpack.c.l.b16 %v361
        %v476 = vunpack.c.h.b16 %v361
        %v477 = vpack.c.b16 %v415, %v413
        %v478 = vpack.c.b16 %v416, %v414
        %v479 = vpack.c.b16 %v419, %v417
        %v480 = vpack.c.b16 %v420, %v418
        %v481 = vpack.c.b16 %v423, %v421
        %v482 = vpack.c.b16 %v424, %v422
        %v483 = vpack.c.b16 %v427, %v425
        %v484 = vpack.c.b16 %v428, %v426
        %v485 = vpack.c.b16 %v431, %v429
        %v486 = vpack.c.b16 %v432, %v430
        %v487 = vpack.c.b16 %v435, %v433
        %v488 = vpack.c.b16 %v436, %v434
        %v489 = vpack.c.b16 %v439, %v437
        %v490 = vpack.c.b16 %v440, %v438
        %v491 = vpack.c.b16 %v443, %v441
        %v492 = vpack.c.b16 %v444, %v442
        %v493 = vpack.c.b16 %v447, %v445
        %v494 = vpack.c.b16 %v448, %v446
        %v495 = vpack.c.b16 %v451, %v449
        %v496 = vpack.c.b16 %v452, %v450
        %v497 = vpack.c.b16 %v455, %v453
        %v498 = vpack.c.b16 %v456, %v454
        %v499 = vpack.c.b16 %v459, %v457
        %v500 = vpack.c.b16 %v460, %v458
        %v501 = vpack.c.b16 %v463, %v461
        %v502 = vpack.c.b16 %v464, %v462
        %v503 = vpack.c.b16 %v467, %v465
        %v504 = vpack.c.b16 %v468, %v466
        %v505 = vpack.c.b16 %v471, %v469
        %v506 = vpack.c.b16 %v472, %v470
        %v507 = vpack.c.b16 %v475, %v473
        %v508 = vpack.c.b16 %v476, %v474
        %541 = vmatprep.subr.bf16.mxu0 %v478
        %542 = vmatpush1.bf16.msra.mxu0 %v477
        %543 = vmatprep.subr.bf16.mxu0 %v480
        %544 = vmatpush1.bf16.msra.mxu0 %v479
        %545 = vmatprep.subr.bf16.mxu0 %v482
        %546 = vmatpush1.bf16.msra.mxu0 %v481
        %547 = vmatprep.subr.bf16.mxu0 %v484
        %548 = vmatpush1.bf16.msra.mxu0 %v483
        %549 = vmatprep.subr.bf16.mxu0 %v486
        %550 = vmatpush1.bf16.msra.mxu0 %v485
        %551 = vmatprep.subr.bf16.mxu0 %v488
        %552 = vmatpush1.bf16.msra.mxu0 %v487
        %553 = vmatprep.subr.bf16.mxu0 %v490
        %554 = vmatpush1.bf16.msra.mxu0 %v489
        %555 = vmatprep.subr.bf16.mxu0 %v492
        %556 = vmatpush1.bf16.msra.mxu0 %v491
        %557 = vmatprep.subr.bf16.mxu0 %v494
        %558 = vmatpush1.bf16.msra.mxu0 %v493
        %559 = vmatprep.subr.bf16.mxu0 %v496
        %560 = vmatpush1.bf16.msra.mxu0 %v495
        %561 = vmatprep.subr.bf16.mxu0 %v498
        %562 = vmatpush1.bf16.msra.mxu0 %v497
        %563 = vmatprep.subr.bf16.mxu0 %v500
        %564 = vmatpush1.bf16.msra.mxu0 %v499
        %565 = vmatprep.subr.bf16.mxu0 %v502
        %566 = vmatpush1.bf16.msra.mxu0 %v501
        %567 = vmatprep.subr.bf16.mxu0 %v504
        %568 = vmatpush1.bf16.msra.mxu0 %v503
        %569 = vmatprep.subr.bf16.mxu0 %v506
        %570 = vmatpush1.bf16.msra.mxu0 %v505
        %571 = vmatprep.subr.bf16.mxu0 %v508
        %572 = vmatpush1.bf16.msra.mxu0 %v507
        %573 = vmatprep.mubr.bf16.mxu0 %v378
        %574 = vmatmul.mubr.bf16.gmra.mrb[0].mxu0 %v377
        %v575 = vpop.f32.mrb[0].mxu0
        %v576 = vadd.f32 %v367, %v575
        %v577 = vpop.f32.mrb[0].mxu0
        %v578 = vadd.f32 %v371, %v577
        %v579 = vpop.f32.mrb[0].mxu0
        %v580 = vpop.f32.mrb[0].mxu0
        %581 = vdwg.mxu0
        %582 = vst [vmem:[%s319] sm:$0xff] %v576
        %583 = vst [vmem:[%s319 + $0x8] sm:$0xff] %v578
        %v584 = vlaneseq
        %v585 = vand.u32 %v584, 127
        %s586 = smul.u32 %s25, 256
        %v587 = vadd.s32 %v585, 128
        %v588 = vstv %s586
        %v589 = vadd.s32 %v588, %v585
        %v590 = vadd.s32 %v588, %v587
        %p591 = scmp.eq.s32.totalorder %s25, 0
        // Predicated region
        $region37: #{fast_autoencoder_forward.2} parent=31 // pred_check
          %p592 = pneg %p591
        $region38: #{fast_autoencoder_forward.2} parent=31 // pred_check_branch
          %594 = sbr.rel (%p592) target = $region40
        $region39: #{fast_autoencoder_forward.2} parent=31 // pred_region
          %595 = vst [vmem:[#allocation2] sm:$0xff] -inf
          %596 = vst [vmem:[#allocation3] sm:$0xff] 1073741824
        $region40: #{fast_autoencoder_forward.2} parent=31 // pred_fallthru
          _
        %v597 = vld [vmem:[#allocation2] sm:$0xff]
        %v598 = vld [vmem:[#allocation3] sm:$0xff]
        loop: start=0, step=1, limit=16
        $region41: #{fast_autoencoder_forward.2} parent=31 // loop_pre_header
          _
        $region42: #{fast_autoencoder_forward.2} parent=31 // loop_header
          %s600 = sphi 0, %s604
          %p601 = scmp.ge.s32.totalorder %s600, 16
          %v605 = vphi %v576, %v660
          %v606 = vphi %v578, %v661
          %v607 = vphi %v597, %v663
          %v608 = vphi -inf, %v656
          %v609 = vphi 1073741824, %v657
        $region43: #{fast_autoencoder_forward.2} parent=31 // loop_header_branch
          %603 = sbr.rel (%p601) target = $region47
        $region44: #{fast_autoencoder_forward.2} parent=31 // loop_body
          %v610 = vmax.f32 %v605, %v606
          %611 = vmax.xlane.f32.xlu0 %v610
          %v612 = vpop.xlane.xlu0 %611
          %613 = vmax.xlane.f32.xlu0 %v607
          %v614 = vpop.xlane.xlu0 %613
          %v615 = vmax.f32 %v612, %v614
          %vm616 = vcmp.eq.f32.partialorder %v605, %v615
          %vm617 = vcmp.eq.f32.partialorder %v606, %v615
          %v618 = vsel %vm616, %v589, 1073741824
          %v619 = vsel %vm617, %v590, 1073741824
          %vm620 = vcmp.lt.s32.totalorder %v618, %v619
          %v621 = vsel %vm620, %v618, %v619
          %v622 = vand.u32 %v621, 65535
          %v623 = vshra.s32 %v621, 16
          %v624 = vcvt.s32.f32 %v622
          %v625 = vcvt.s32.f32 %v623
          %626 = vmin.xlane.f32.xlu0 %v625
          %v627 = vpop.xlane.xlu0 %626
          %vm628 = vcmp.eq.f32.partialorder %v625, %v627
          %v629 = vsel %vm628, %v624, inf
          %630 = vmin.xlane.f32.xlu0 %v629
          %v631 = vpop.xlane.xlu0 %630
          %v632 = vcvt.f32.s32 %v631
          %v633 = vcvt.f32.s32 %v627
          %v634 = vshll.u32 %v633, 16
          %v635 = vadd.s32 %v634, %v632
          %vm636 = vcmp.eq.f32.partialorder %v607, %v615
          %v637 = vsel %vm636, %v598, 1073741824
          %v638 = vand.u32 %v637, 65535
          %v639 = vshra.s32 %v637, 16
          %v640 = vcvt.s32.f32 %v638
          %v641 = vcvt.s32.f32 %v639
          %642 = vmin.xlane.f32.xlu0 %v641
          %v643 = vpop.xlane.xlu0 %642
          %vm644 = vcmp.eq.f32.partialorder %v641, %v643
          %v645 = vsel %vm644, %v640, inf
          %646 = vmin.xlane.f32.xlu0 %v645
          %v647 = vpop.xlane.xlu0 %646
          %v648 = vcvt.f32.s32 %v647
          %v649 = vcvt.f32.s32 %v643
          %v650 = vshll.u32 %v649, 16
          %v651 = vadd.s32 %v650, %v648
          %vm652 = vcmp.lt.s32.totalorder %v635, %v651
          %v653 = vsel %vm652, %v635, %v651
          %v654 = vstv %s600
          %vm655 = vcmp.eq.s32.totalorder %v585, %v654
          %v656 = vsel %vm655, %v615, %v608
          %v657 = vsel %vm655, %v653, %v609
          %vm658 = vcmp.eq.s32.totalorder %v589, %v653
          %vm659 = vcmp.eq.s32.totalorder %v590, %v653
          %v660 = vsel %vm658, -inf, %v605
          %v661 = vsel %vm659, -inf, %v606
          %vm662 = vcmp.eq.s32.totalorder %v598, %v653
          %v663 = vsel %vm662, -inf, %v607
        $region45: #{fast_autoencoder_forward.2} parent=31 // loop_footer
          %s604 = sadd.s32 1, %s600
        $region46: #{fast_autoencoder_forward.2} parent=31 // loop_footer_branch
          %599 = sbr.rel target = $region42
        $region47: #{fast_autoencoder_forward.2} parent=31 // loop_exit
          _
        %664 = vst [vmem:[#allocation2] sm:$0xff] %v608
        %665 = vst [vmem:[#allocation3] sm:$0xff] %v609
        %p666 = scmp.eq.s32.totalorder %s25, 1
        // Predicated region
        $region48: #{fast_autoencoder_forward.2} parent=31 // pred_check
          %p667 = pneg %p666
        $region49: #{fast_autoencoder_forward.2} parent=31 // pred_check_branch
          %669 = sbr.rel (%p667) target = $region51
        $region50: #{fast_autoencoder_forward.2} parent=31 // pred_region
          %v670 = vmax.f32 %v608, 0.0
          %671 = vst [vmem:[%s324] sm:$0xff] %v670
          %vm672 = vcmp.lt.s32.totalorder %v585, 16
          %v673 = vsel %vm672, %v609, 0
          %674 = vst [vmem:[%s328] sm:$0xff] %v673
        $region51: #{fast_autoencoder_forward.2} parent=31 // pred_fallthru
          _
        %s675 = smul.u32 2, %s25
        %p676 = scmp.lt.s32.totalorder %s24, 1
        %s677 = scalar_select %p676, %s24, 1
        %p678 = scmp.lt.s32.totalorder %s675, 3
        %s679 = scalar_select %p678, %s675, 3
        %s680 = smul.addr %s677, 4
        %s681 = sadd.s32 %s679, %s680
        %s682 = smul.addr %s681, 8
        %s683 = scalar_lea.vmem %s3, %s682
        %p684 = scmp.lt.s32.totalorder %s24, 1
        %s685 = scalar_select %p684, %s24, 1
        %s686 = smul.addr %s685, 8
        %s687 = scalar_lea.vmem %s4, %s686
        %p688 = scmp.lt.s32.totalorder %s24, 1
        %s689 = scalar_select %p688, %s24, 1
        %s690 = smul.addr %s689, 8
        %s691 = scalar_lea.vmem %s5, %s690
        // Predicated region
        $region52: #{fast_autoencoder_forward.2} parent=31 // pred_check
          %p692 = pneg %p130
        $region53: #{fast_autoencoder_forward.2} parent=31 // pred_check_branch
          %694 = sbr.rel (%p692) target = $region55
        $region54: #{fast_autoencoder_forward.2} parent=31 // pred_region
          %s695 = smul.u32 2, %s25
        $region55: #{fast_autoencoder_forward.2} parent=31 // pred_fallthru
          _
        // Predicated region
        $region56: #{fast_autoencoder_forward.2} parent=31 // pred_check
          %p696 = pneg %p156
        $region57: #{fast_autoencoder_forward.2} parent=31 // pred_check_branch
          %698 = sbr.rel (%p696) target = $region59
        $region58: #{fast_autoencoder_forward.2} parent=31 // pred_region
          _
        $region59: #{fast_autoencoder_forward.2} parent=31 // pred_fallthru
          _
        // Predicated region
        $region60: #{fast_autoencoder_forward.2} parent=31 // pred_check
          %p699 = pneg %p182
        $region61: #{fast_autoencoder_forward.2} parent=31 // pred_check_branch
          %701 = sbr.rel (%p699) target = $region63
        $region62: #{fast_autoencoder_forward.2} parent=31 // pred_region
          _
        $region63: #{fast_autoencoder_forward.2} parent=31 // pred_fallthru
          _
      $region32: #{fast_autoencoder_forward.2} parent=5 // pred_fallthru
        _
      %p702 = scmp.le.s32.totalorder 2, %s15
      // Predicated region
      $region64: #{fast_autoencoder_forward.2} parent=5 // pred_check
        %p703 = pneg %p702
      $region65: #{fast_autoencoder_forward.2} parent=5 // pred_check_branch
        %705 = sbr.rel (%p703) target = $region67
      $region66: #{fast_autoencoder_forward.2} parent=5 // pred_region
        %s706 = ssub.s32 %s15, 2
        // Predicated region
        $region68: #{fast_autoencoder_forward.2} parent=66 // pred_check
          %p707 = pneg %p136
        $region69: #{fast_autoencoder_forward.2} parent=66 // pred_check_branch
          %709 = sbr.rel (%p707) target = $region71
        $region70: #{fast_autoencoder_forward.2} parent=66 // pred_region
          %s710 = smul.u32 2, %s27
          %p711 = scmp.lt.s32.totalorder %s26, 1
          %s712 = scalar_select %p711, %s26, 1
          %p713 = scmp.lt.s32.totalorder %s710, 3
          %s714 = scalar_select %p713, %s710, 3
          %s715 = smul.addr %s712, 4
          %s716 = sadd.s32 %s714, %s715
          %s717 = smul.addr %s716, 8
          %s718 = scalar_lea.vmem %s3, %s717
        $region71: #{fast_autoencoder_forward.2} parent=66 // pred_fallthru
          _
        // Predicated region
        $region72: #{fast_autoencoder_forward.2} parent=66 // pred_check
          %p719 = pneg %p162
        $region73: #{fast_autoencoder_forward.2} parent=66 // pred_check_branch
          %721 = sbr.rel (%p719) target = $region75
        $region74: #{fast_autoencoder_forward.2} parent=66 // pred_region
          %p722 = scmp.lt.s32.totalorder %s26, 1
          %s723 = scalar_select %p722, %s26, 1
          %s724 = smul.addr %s723, 8
          %s725 = scalar_lea.vmem %s4, %s724
        $region75: #{fast_autoencoder_forward.2} parent=66 // pred_fallthru
          _
        // Predicated region
        $region76: #{fast_autoencoder_forward.2} parent=66 // pred_check
          %p726 = pneg %p188
        $region77: #{fast_autoencoder_forward.2} parent=66 // pred_check_branch
          %728 = sbr.rel (%p726) target = $region79
        $region78: #{fast_autoencoder_forward.2} parent=66 // pred_region
          %p729 = scmp.lt.s32.totalorder %s26, 1
          %s730 = scalar_select %p729, %s26, 1
          %s731 = smul.addr %s730, 8
          %s732 = scalar_lea.vmem %s5, %s731
        $region79: #{fast_autoencoder_forward.2} parent=66 // pred_fallthru
          _
      $region67: #{fast_autoencoder_forward.2} parent=5 // pred_fallthru
        _
    $region6: #{fast_autoencoder_forward.2} parent=1 // loop_footer
      %s19 = sadd.s32 1, %s15
    $region7: #{fast_autoencoder_forward.2} parent=1 // loop_footer_branch
      %14 = sbr.rel target = $region3
    $region8: #{fast_autoencoder_forward.2} parent=1 // loop_exit
      _
    %733 = vsyncpa [#allocation5], 1
    %s734 = scalar_lea.sflag [#allocation5], 1
    %735 = vsyncpa %s734, 1

// kernel: fast_autoencoder_forward.3
$region0: #{fast_autoencoder_forward.3}
  #allocation0 [shape = 'u32[]', space=smem, size = 0x4, offset = 0x4, fixed_abs, tag = 'smem constant byte address 0x4 - core index']
  #allocation1 [shape = 'u32[144,128]{1,0:T(1,128)}', space=vmem, size = 0x12000, scoped, tag = 'internal scratch']
  #allocation2 [shape = 'f32[16,256]{1,0:T(8,128)}', space=vmem, size = 0x4000, scoped, tag = 'scratch operand']
  #allocation3 [shape = 'f32[8,128]{1,0:T(8,128)}', space=vmem, size = 0x1000, scoped, tag = 'scratch operand']
  #allocation4 [shape = 's32[8,128]{1,0:T(8,128)}', space=vmem, size = 0x1000, scoped, tag = 'scratch operand']
  %s0 = inlined_call_operand.vmem [shape: f32[16,128], index: 0, kind: input, shape index: {}]
  %s1 = inlined_call_operand.vmem [shape: s32[16,128], index: 1, kind: input, shape index: {}]
  %s2 = inlined_call_operand.vmem [shape: f32[16,512], index: 2, kind: input, shape index: {}]
  %s3 = inlined_call_operand.vmem [shape: f32[1,512], index: 3, kind: input, shape index: {}]
  %s4 = inlined_call_operand.vmem [shape: bf16[512,256], index: 4, kind: input, shape index: {}]
  %s5 = inlined_call_operand.vmem [shape: f32[1,256], index: 5, kind: input, shape index: {}]
  %s6 = inlined_call_operand.hbm [shape: f32[16,256], index: 6, kind: output, shape index: {0}]
  %s7 = inlined_call_operand.hbm [shape: f32[16,256], index: 7, kind: output, shape index: {1}]
  %s8 = inlined_call_operand.vmem [shape: f32[16,128], index: 8, kind: output, shape index: {2}]
  %s9 = inlined_call_operand.vmem [shape: s32[16,128], index: 9, kind: output, shape index: {3}]
  %10 = xla_tuple %s6, %s7, %s8, %s9
  %s11 = sld [smem:[#allocation0]]
  $region100: #{fast_autoencoder_forward.3} parent=0
    _
  %s13 = ssub.s32 1, %s11
  %s14 = scalar_select 0, %s13, %s11
  $region1: #{fast_autoencoder_forward.3} parent=0
    #allocation5 [shape = 'u8[16384]{0}', space=vmem, size = 0x4000, scoped, tag = 'output window, operand 0']
    #allocation6 [shape = 's32[2]{0}', space=sflag, size = 0x8, scoped, tag = 'scoped memory for fast_autoencoder_forward.3']
    #allocation7 [shape = 'u8[16384]{0}', space=vmem, size = 0x4000, scoped, tag = 'output window, operand 1']
    #allocation8 [shape = 's32[2]{0}', space=sflag, size = 0x8, scoped, tag = 'scoped memory for fast_autoencoder_forward.3']
    %15 = vsyncpa [#allocation6], 0
    %s16 = scalar_lea.sflag [#allocation6], 1
    %17 = vsyncpa %s16, 0
    %18 = vsyncpa [#allocation8], 0
    %s19 = scalar_lea.sflag [#allocation8], 1
    %20 = vsyncpa %s19, 0
    loop: start=0, step=1, limit=6
    $region2: #{fast_autoencoder_forward.3} parent=1 // loop_pre_header
      _
    $region3: #{fast_autoencoder_forward.3} parent=1 // loop_header
      %s22 = sphi 0, %s26
      %p23 = scmp.ge.s32.totalorder %s22, 6
      %s29 = sphi 0, %s41
      %s30 = sphi 0, %s37
      %s31 = sphi 0, %s29
      %s32 = sphi 0, %s30
      %s33 = sphi 0, %s31
      %s34 = sphi 0, %s32
      %s44 = sphi 0, %s46
      %s47 = sphi 0, %s44
      %s48 = sphi 0, %s47
      %s64 = sphi 0, %s48
      %s70 = sphi 0, %s72
      %s73 = sphi 0, %s70
      %s74 = sphi 0, %s73
      %s90 = sphi 0, %s74
      %s98 = sphi 0, %s100
      %s101 = sphi 0, %s98
      %s102 = sphi 0, %s101
      %s118 = sphi 0, %s102
      %s124 = sphi 0, %s126
      %s127 = sphi 0, %s124
      %s128 = sphi 0, %s127
      %s144 = sphi 0, %s128
      %s150 = sphi 0, %s152
      %s153 = sphi 0, %s150
      %s154 = sphi 0, %s153
      %s170 = sphi 0, %s154
      %s174 = sphi 0, %s174
      %s176 = sphi 0, %s174
      %s177 = sphi 0, %s176
      %s191 = sphi 0, %s177
      %s197 = sphi 0, %s199
      %s200 = sphi 0, %s197
      %s201 = sphi 0, %s200
      %s217 = sphi 0, %s201
      %s223 = sphi 0, %s225
      %s226 = sphi 0, %s223
      %s227 = sphi 0, %s226
      %s243 = sphi 0, %s227
      %s249 = sphi 0, %s251
      %s252 = sphi 0, %s249
      %s253 = sphi 0, %s252
      %s269 = sphi 0, %s253
      %s275 = sphi 0, %s277
      %s278 = sphi 0, %s275
      %s279 = sphi 0, %s278
      %s295 = sphi 0, %s279
    $region4: #{fast_autoencoder_forward.3} parent=1 // loop_header_branch
      %25 = sbr.rel (%p23) target = $region8
    $region5: #{fast_autoencoder_forward.3} parent=1 // loop_body
      %s27 = ssub.s32 %s22, 1
      %s28 = ssub.s32 %s22, 2
      %s35 = sadd.s32 1, %s30
      %p36 = scmp.ge.s32.totalorder %s35, 2
      %s37 = scalar_select %p36, 0, %s35
      %s38 = sadd.s32 1, %s29
      %s39 = scalar_select %p36, %s38, %s29
      %p40 = scmp.ge.s32.totalorder %s39, 2
      %s41 = scalar_select %p40, 0, %s39
      %s42 = ssub.s32 %s29, %s41
      %p43 = scmp.eq.s32.totalorder %s42, 0
      %s45 = sadd.s32 %s44, 1
      %s46 = scalar_select %p43, %s44, %s45
      %p49 = pneg %p43
      %p50 = scmp.eq.s32.totalorder %s22, 3
      %p51 = por %p49, %p50
      %p52 = scmp.ne.s32.totalorder %s44, %s47
      %p53 = scmp.eq.s32.totalorder %s22, 0
      %p54 = por %p52, %p53
      %p55 = scmp.ne.s32.totalorder %s44, %s47
      %p56 = scmp.eq.s32.totalorder %s27, 3
      %p57 = por %p55, %p56
      %p58 = scmp.ne.s32.totalorder %s47, %s48
      %p59 = scmp.eq.s32.totalorder %s27, 0
      %p60 = por %p58, %p59
      %p61 = scmp.ne.s32.totalorder %s47, %s48
      %p62 = scmp.eq.s32.totalorder %s28, 3
      %p63 = por %p61, %p62
      %p65 = scmp.ne.s32.totalorder %s48, %s64
      %p66 = scmp.eq.s32.totalorder %s28, 0
      %p67 = por %p65, %p66
      %s68 = ssub.s32 %s29, %s41
      %p69 = scmp.eq.s32.totalorder %s68, 0
      %s71 = sadd.s32 %s70, 1
      %s72 = scalar_select %p69, %s70, %s71
      %p75 = pneg %p69
      %p76 = scmp.eq.s32.totalorder %s22, 3
      %p77 = por %p75, %p76
      %p78 = scmp.ne.s32.totalorder %s70, %s73
      %p79 = scmp.eq.s32.totalorder %s22, 0
      %p80 = por %p78, %p79
      %p81 = scmp.ne.s32.totalorder %s70, %s73
      %p82 = scmp.eq.s32.totalorder %s27, 3
      %p83 = por %p81, %p82
      %p84 = scmp.ne.s32.totalorder %s73, %s74
      %p85 = scmp.eq.s32.totalorder %s27, 0
      %p86 = por %p84, %p85
      %p87 = scmp.ne.s32.totalorder %s73, %s74
      %p88 = scmp.eq.s32.totalorder %s28, 3
      %p89 = por %p87, %p88
      %p91 = scmp.ne.s32.totalorder %s74, %s90
      %p92 = scmp.eq.s32.totalorder %s28, 0
      %p93 = por %p91, %p92
      %s94 = ssub.s32 %s29, %s41
      %s95 = ssub.s32 %s30, %s37
      %s96 = sor.u32 %s94, %s95
      %p97 = scmp.eq.s32.totalorder %s96, 0
      %s99 = sadd.s32 %s98, 1
      %s100 = scalar_select %p97, %s98, %s99
      %p103 = pneg %p97
      %p104 = scmp.eq.s32.totalorder %s22, 3
      %p105 = por %p103, %p104
      %p106 = scmp.ne.s32.totalorder %s98, %s101
      %p107 = scmp.eq.s32.totalorder %s22, 0
      %p108 = por %p106, %p107
      %p109 = scmp.ne.s32.totalorder %s98, %s101
      %p110 = scmp.eq.s32.totalorder %s27, 3
      %p111 = por %p109, %p110
      %p112 = scmp.ne.s32.totalorder %s101, %s102
      %p113 = scmp.eq.s32.totalorder %s27, 0
      %p114 = por %p112, %p113
      %p115 = scmp.ne.s32.totalorder %s101, %s102
      %p116 = scmp.eq.s32.totalorder %s28, 3
      %p117 = por %p115, %p116
      %p119 = scmp.ne.s32.totalorder %s102, %s118
      %p120 = scmp.eq.s32.totalorder %s28, 0
      %p121 = por %p119, %p120
      %s122 = ssub.s32 %s30, %s37
      %p123 = scmp.eq.s32.totalorder %s122, 0
      %s125 = sadd.s32 %s124, 1
      %s126 = scalar_select %p123, %s124, %s125
      %p129 = pneg %p123
      %p130 = scmp.eq.s32.totalorder %s22, 3
      %p131 = por %p129, %p130
      %p132 = scmp.ne.s32.totalorder %s124, %s127
      %p133 = scmp.eq.s32.totalorder %s22, 0
      %p134 = por %p132, %p133
      %p135 = scmp.ne.s32.totalorder %s124, %s127
      %p136 = scmp.eq.s32.totalorder %s27, 3
      %p137 = por %p135, %p136
      %p138 = scmp.ne.s32.totalorder %s127, %s128
      %p139 = scmp.eq.s32.totalorder %s27, 0
      %p140 = por %p138, %p139
      %p141 = scmp.ne.s32.totalorder %s127, %s128
      %p142 = scmp.eq.s32.totalorder %s28, 3
      %p143 = por %p141, %p142
      %p145 = scmp.ne.s32.totalorder %s128, %s144
      %p146 = scmp.eq.s32.totalorder %s28, 0
      %p147 = por %p145, %p146
      %s148 = ssub.s32 %s30, %s37
      %p149 = scmp.eq.s32.totalorder %s148, 0
      %s151 = sadd.s32 %s150, 1
      %s152 = scalar_select %p149, %s150, %s151
      %p155 = pneg %p149
      %p156 = scmp.eq.s32.totalorder %s22, 3
      %p157 = por %p155, %p156
      %p158 = scmp.ne.s32.totalorder %s150, %s153
      %p159 = scmp.eq.s32.totalorder %s22, 0
      %p160 = por %p158, %p159
      %p161 = scmp.ne.s32.totalorder %s150, %s153
      %p162 = scmp.eq.s32.totalorder %s27, 3
      %p163 = por %p161, %p162
      %p164 = scmp.ne.s32.totalorder %s153, %s154
      %p165 = scmp.eq.s32.totalorder %s27, 0
      %p166 = por %p164, %p165
      %p167 = scmp.ne.s32.totalorder %s153, %s154
      %p168 = scmp.eq.s32.totalorder %s28, 3
      %p169 = por %p167, %p168
      %p171 = scmp.ne.s32.totalorder %s154, %s170
      %p172 = scmp.eq.s32.totalorder %s28, 0
      %p173 = por %p171, %p172
      %s175 = sadd.s32 %s174, 1
      %p178 = scmp.eq.s32.totalorder %s22, 3
      %p179 = scmp.ne.s32.totalorder %s174, %s176
      %p180 = scmp.eq.s32.totalorder %s22, 0
      %p181 = por %p179, %p180
      %p182 = scmp.ne.s32.totalorder %s174, %s176
      %p183 = scmp.eq.s32.totalorder %s27, 3
      %p184 = por %p182, %p183
      %p185 = scmp.ne.s32.totalorder %s176, %s177
      %p186 = scmp.eq.s32.totalorder %s27, 0
      %p187 = por %p185, %p186
      %p188 = scmp.ne.s32.totalorder %s176, %s177
      %p189 = scmp.eq.s32.totalorder %s28, 3
      %p190 = por %p188, %p189
      %p192 = scmp.ne.s32.totalorder %s177, %s191
      %p193 = scmp.eq.s32.totalorder %s28, 0
      %p194 = por %p192, %p193
      %s195 = ssub.s32 %s29, %s41
      %p196 = scmp.eq.s32.totalorder %s195, 0
      %s198 = sadd.s32 %s197, 1
      %s199 = scalar_select %p196, %s197, %s198
      %p202 = pneg %p196
      %p203 = scmp.eq.s32.totalorder %s22, 3
      %p204 = por %p202, %p203
      %p205 = scmp.ne.s32.totalorder %s197, %s200
      %p206 = scmp.eq.s32.totalorder %s22, 0
      %p207 = por %p205, %p206
      %p208 = scmp.ne.s32.totalorder %s197, %s200
      %p209 = scmp.eq.s32.totalorder %s27, 3
      %p210 = por %p208, %p209
      %p211 = scmp.ne.s32.totalorder %s200, %s201
      %p212 = scmp.eq.s32.totalorder %s27, 0
      %p213 = por %p211, %p212
      %p214 = scmp.ne.s32.totalorder %s200, %s201
      %p215 = scmp.eq.s32.totalorder %s28, 3
      %p216 = por %p214, %p215
      %p218 = scmp.ne.s32.totalorder %s201, %s217
      %p219 = scmp.eq.s32.totalorder %s28, 0
      %p220 = por %p218, %p219
      %s221 = ssub.s32 %s29, %s41
      %p222 = scmp.eq.s32.totalorder %s221, 0
      %s224 = sadd.s32 %s223, 1
      %s225 = scalar_select %p222, %s223, %s224
      %p228 = pneg %p222
      %p229 = scmp.eq.s32.totalorder %s22, 3
      %p230 = por %p228, %p229
      %p231 = scmp.ne.s32.totalorder %s223, %s226
      %p232 = scmp.eq.s32.totalorder %s22, 0
      %p233 = por %p231, %p232
      %p234 = scmp.ne.s32.totalorder %s223, %s226
      %p235 = scmp.eq.s32.totalorder %s27, 3
      %p236 = por %p234, %p235
      %p237 = scmp.ne.s32.totalorder %s226, %s227
      %p238 = scmp.eq.s32.totalorder %s27, 0
      %p239 = por %p237, %p238
      %p240 = scmp.ne.s32.totalorder %s226, %s227
      %p241 = scmp.eq.s32.totalorder %s28, 3
      %p242 = por %p240, %p241
      %p244 = scmp.ne.s32.totalorder %s227, %s243
      %p245 = scmp.eq.s32.totalorder %s28, 0
      %p246 = por %p244, %p245
      %s247 = ssub.s32 %s29, %s41
      %p248 = scmp.eq.s32.totalorder %s247, 0
      %s250 = sadd.s32 %s249, 1
      %s251 = scalar_select %p248, %s249, %s250
      %p254 = pneg %p248
      %p255 = scmp.eq.s32.totalorder %s22, 3
      %p256 = por %p254, %p255
      %p257 = scmp.ne.s32.totalorder %s249, %s252
      %p258 = scmp.eq.s32.totalorder %s22, 0
      %p259 = por %p257, %p258
      %p260 = scmp.ne.s32.totalorder %s249, %s252
      %p261 = scmp.eq.s32.totalorder %s27, 3
      %p262 = por %p260, %p261
      %p263 = scmp.ne.s32.totalorder %s252, %s253
      %p264 = scmp.eq.s32.totalorder %s27, 0
      %p265 = por %p263, %p264
      %p266 = scmp.ne.s32.totalorder %s252, %s253
      %p267 = scmp.eq.s32.totalorder %s28, 3
      %p268 = por %p266, %p267
      %p270 = scmp.ne.s32.totalorder %s253, %s269
      %p271 = scmp.eq.s32.totalorder %s28, 0
      %p272 = por %p270, %p271
      %s273 = ssub.s32 %s29, %s41
      %p274 = scmp.eq.s32.totalorder %s273, 0
      %s276 = sadd.s32 %s275, 1
      %s277 = scalar_select %p274, %s275, %s276
      %p280 = pneg %p274
      %p281 = scmp.eq.s32.totalorder %s22, 3
      %p282 = por %p280, %p281
      %p283 = scmp.ne.s32.totalorder %s275, %s278
      %p284 = scmp.eq.s32.totalorder %s22, 0
      %p285 = por %p283, %p284
      %p286 = scmp.ne.s32.totalorder %s275, %s278
      %p287 = scmp.eq.s32.totalorder %s27, 3
      %p288 = por %p286, %p287
      %p289 = scmp.ne.s32.totalorder %s278, %s279
      %p290 = scmp.eq.s32.totalorder %s27, 0
      %p291 = por %p289, %p290
      %p292 = scmp.ne.s32.totalorder %s278, %s279
      %p293 = scmp.eq.s32.totalorder %s28, 3
      %p294 = por %p292, %p293
      %p296 = scmp.ne.s32.totalorder %s279, %s295
      %p297 = scmp.eq.s32.totalorder %s28, 0
      %p298 = por %p296, %p297
      %p299 = scmp.le.s32.totalorder 1, %s22
      %p300 = scmp.lt.s32.totalorder %s22, 5
      %p301 = pnand %p299, %p300
      %p302 = pneg %p301
      // Predicated region
      $region9: #{fast_autoencoder_forward.3} parent=5 // pred_check
        _
      $region10: #{fast_autoencoder_forward.3} parent=5 // pred_check_branch
        %304 = sbr.rel (%p301) target = $region12
      $region11: #{fast_autoencoder_forward.3} parent=5 // pred_region
        %s305 = ssub.s32 %s22, 1
        // Predicated region
        $region13: #{fast_autoencoder_forward.3} parent=11 // pred_check
          %p306 = pneg %p187
        $region14: #{fast_autoencoder_forward.3} parent=11 // pred_check_branch
          %308 = sbr.rel (%p306) target = $region16
        $region15: #{fast_autoencoder_forward.3} parent=11 // pred_region
          _
        $region16: #{fast_autoencoder_forward.3} parent=11 // pred_fallthru
          _
      $region12: #{fast_autoencoder_forward.3} parent=5 // pred_fallthru
        _
      %p309 = scmp.lt.s32.totalorder %s22, 4
      // Predicated region
      $region17: #{fast_autoencoder_forward.3} parent=5 // pred_check
        %p310 = pneg %p309
      $region18: #{fast_autoencoder_forward.3} parent=5 // pred_check_branch
        %312 = sbr.rel (%p310) target = $region20
      $region19: #{fast_autoencoder_forward.3} parent=5 // pred_region
        // Predicated region
        $region21: #{fast_autoencoder_forward.3} parent=19 // pred_check
          %p313 = pneg %p54
        $region22: #{fast_autoencoder_forward.3} parent=19 // pred_check_branch
          %315 = sbr.rel (%p313) target = $region24
        $region23: #{fast_autoencoder_forward.3} parent=19 // pred_region
          %p316 = scmp.lt.s32.totalorder %s29, 1
          %s317 = scalar_select %p316, %s29, 1
          %s318 = smul.addr %s317, 8
          %s319 = scalar_lea.vmem %s0, %s318
        $region24: #{fast_autoencoder_forward.3} parent=19 // pred_fallthru
          _
        // Predicated region
        $region25: #{fast_autoencoder_forward.3} parent=19 // pred_check
          %p320 = pneg %p80
        $region26: #{fast_autoencoder_forward.3} parent=19 // pred_check_branch
          %322 = sbr.rel (%p320) target = $region28
        $region27: #{fast_autoencoder_forward.3} parent=19 // pred_region
          %p323 = scmp.lt.s32.totalorder %s29, 1
          %s324 = scalar_select %p323, %s29, 1
          %s325 = smul.addr %s324, 8
          %s326 = scalar_lea.vmem %s1, %s325
        $region28: #{fast_autoencoder_forward.3} parent=19 // pred_fallthru
          _
        // Predicated region
        $region29: #{fast_autoencoder_forward.3} parent=19 // pred_check
          %p327 = pneg %p108
        $region30: #{fast_autoencoder_forward.3} parent=19 // pred_check_branch
          %329 = sbr.rel (%p327) target = $region32
        $region31: #{fast_autoencoder_forward.3} parent=19 // pred_region
          %s330 = smul.u32 2, %s30
          %p331 = scmp.lt.s32.totalorder %s29, 1
          %s332 = scalar_select %p331, %s29, 1
          %p333 = scmp.lt.s32.totalorder %s330, 3
          %s334 = scalar_select %p333, %s330, 3
          %s335 = smul.addr %s332, 4
          %s336 = sadd.s32 %s334, %s335
          %s337 = smul.addr %s336, 8
          %s338 = scalar_lea.vmem %s2, %s337
          %s339 = smul.u32 2, %s30
        $region32: #{fast_autoencoder_forward.3} parent=19 // pred_fallthru
          _
        // Predicated region
        $region33: #{fast_autoencoder_forward.3} parent=19 // pred_check
          %p340 = pneg %p134
        $region34: #{fast_autoencoder_forward.3} parent=19 // pred_check_branch
          %342 = sbr.rel (%p340) target = $region36
        $region35: #{fast_autoencoder_forward.3} parent=19 // pred_region
          %s343 = smul.u32 2, %s30
          %p344 = scmp.lt.s32.totalorder %s343, 3
          %s345 = scalar_select %p344, %s343, 3
          %s346 = scalar_lea.vmem %s3, %s345
          %s347 = smul.u32 2, %s30
        $region36: #{fast_autoencoder_forward.3} parent=19 // pred_fallthru
          _
        // Predicated region
        $region37: #{fast_autoencoder_forward.3} parent=19 // pred_check
          %p348 = pneg %p160
        $region38: #{fast_autoencoder_forward.3} parent=19 // pred_check_branch
          %350 = sbr.rel (%p348) target = $region40
        $region39: #{fast_autoencoder_forward.3} parent=19 // pred_region
          %s351 = smul.u32 32, %s30
          %p352 = scmp.lt.s32.totalorder %s351, 63
          %s353 = scalar_select %p352, %s351, 63
          %s354 = smul.addr %s353, 2
          %s355 = smul.addr %s354, 4
          %s356 = scalar_lea.vmem %s4, %s355
          %s357 = smul.u32 32, %s30
        $region40: #{fast_autoencoder_forward.3} parent=19 // pred_fallthru
          _
      $region20: #{fast_autoencoder_forward.3} parent=5 // pred_fallthru
        _
      %p358 = scmp.le.s32.totalorder 1, %s22
      %p359 = scmp.lt.s32.totalorder %s22, 5
      %p360 = pnand %p358, %p359
      %p361 = pneg %p360
      // Predicated region
      $region41: #{fast_autoencoder_forward.3} parent=5 // pred_check
        _
      $region42: #{fast_autoencoder_forward.3} parent=5 // pred_check_branch
        %363 = sbr.rel (%p360) target = $region44
      $region43: #{fast_autoencoder_forward.3} parent=5 // pred_region
        %s364 = ssub.s32 %s22, 1
        %p365 = scmp.lt.s32.totalorder %s31, 1
        %s366 = scalar_select %p365, %s31, 1
        %s367 = smul.addr %s366, 8
        %s368 = scalar_lea.vmem %s0, %s367
        %p369 = pneg %p60
        %p370 = pneg %p57
        %p371 = scmp.lt.s32.totalorder %s31, 1
        %s372 = scalar_select %p371, %s31, 1
        %s373 = smul.addr %s372, 8
        %s374 = scalar_lea.vmem %s1, %s373
        %p375 = pneg %p86
        %p376 = pneg %p83
        %s377 = smul.u32 2, %s32
        %p378 = scmp.lt.s32.totalorder %s31, 1
        %s379 = scalar_select %p378, %s31, 1
        %p380 = scmp.lt.s32.totalorder %s377, 3
        %s381 = scalar_select %p380, %s377, 3
        %s382 = smul.addr %s379, 4
        %s383 = sadd.s32 %s381, %s382
        %s384 = smul.addr %s383, 8
        %s385 = scalar_lea.vmem %s2, %s384
        %p386 = pneg %p114
        %p387 = pneg %p111
        %s388 = smul.u32 2, %s32
        %p389 = scmp.lt.s32.totalorder %s388, 3
        %s390 = scalar_select %p389, %s388, 3
        %s391 = scalar_lea.vmem %s3, %s390
        %p392 = pneg %p140
        %p393 = pneg %p137
        %s394 = smul.u32 32, %s32
        %p395 = scmp.lt.s32.totalorder %s394, 63
        %s396 = scalar_select %p395, %s394, 63
        %s397 = smul.addr %s396, 2
        %s398 = smul.addr %s397, 4
        %s399 = scalar_lea.vmem %s4, %s398
        %p400 = pneg %p166
        %p401 = pneg %p163
        %p402 = pneg %p187
        %p403 = pneg %p184
        %p404 = pneg %p213
        %p405 = pneg %p210
        %s406 = sand.u32 %s200, 1
        %s407 = scalar_lea.sflag [#allocation6], %s406
        %s408 = sand.u32 %s200, 1
        %s409 = smul.addr %s408, 16
        %s410 = scalar_lea.vmem [#allocation5], %s409
        %p411 = pneg %p239
        %p412 = pneg %p236
        %s413 = sand.u32 %s226, 1
        %s414 = scalar_lea.sflag [#allocation8], %s413
        %s415 = sand.u32 %s226, 1
        %s416 = smul.addr %s415, 16
        %s417 = scalar_lea.vmem [#allocation7], %s416
        %p418 = pneg %p265
        %p419 = pneg %p262
        %p420 = scmp.lt.s32.totalorder %s31, 1
        %s421 = scalar_select %p420, %s31, 1
        %s422 = smul.addr %s421, 8
        %s423 = scalar_lea.vmem %s8, %s422
        %p424 = pneg %p291
        %p425 = pneg %p288
        %p426 = scmp.lt.s32.totalorder %s31, 1
        %s427 = scalar_select %p426, %s31, 1
        %s428 = smul.addr %s427, 8
        %s429 = scalar_lea.vmem %s9, %s428
        %p430 = scmp.lt.s32.totalorder %s31, 1
        %s431 = scalar_select %p430, %s31, 1
        %s432 = smul.addr %s431, 8
        %s433 = scalar_lea.vmem %s0, %s432
        %p434 = scmp.lt.s32.totalorder %s31, 1
        %s435 = scalar_select %p434, %s31, 1
        %s436 = smul.addr %s435, 8
        %s437 = scalar_lea.vmem %s1, %s436
        %s438 = smul.u32 2, %s32
        %p439 = scmp.lt.s32.totalorder %s31, 1
        %s440 = scalar_select %p439, %s31, 1
        %p441 = scmp.lt.s32.totalorder %s438, 3
        %s442 = scalar_select %p441, %s438, 3
        %s443 = smul.addr %s440, 4
        %s444 = sadd.s32 %s442, %s443
        %s445 = smul.addr %s444, 8
        %s446 = scalar_lea.vmem %s2, %s445
        %s447 = smul.u32 2, %s32
        %s448 = smul.u32 2, %s32
        %p449 = scmp.lt.s32.totalorder %s448, 3
        %s450 = scalar_select %p449, %s448, 3
        %s451 = scalar_lea.vmem %s3, %s450
        %s452 = smul.u32 2, %s32
        %s453 = smul.u32 32, %s32
        %p454 = scmp.lt.s32.totalorder %s453, 63
        %s455 = scalar_select %p454, %s453, 63
        %s456 = smul.addr %s455, 2
        %s457 = smul.addr %s456, 4
        %s458 = scalar_lea.vmem %s4, %s457
        %s459 = smul.u32 32, %s32
        %p460 = scmp.lt.s32.totalorder %s31, 1
        %s461 = scalar_select %p460, %s31, 1
        %s462 = smul.addr %s461, 8
        %s463 = scalar_lea.vmem %s8, %s462
        %p464 = scmp.lt.s32.totalorder %s31, 1
        %s465 = scalar_select %p464, %s31, 1
        %s466 = smul.addr %s465, 8
        %s467 = scalar_lea.vmem %s9, %s466
        %p468 = scmp.eq.s32.totalorder %s32, 0
        // Predicated region
        $region45: #{fast_autoencoder_forward.3} parent=43 // pred_check
          %p469 = pneg %p468
        $region46: #{fast_autoencoder_forward.3} parent=43 // pred_check_branch
          %471 = sbr.rel (%p469) target = $region48
        $region47: #{fast_autoencoder_forward.3} parent=43 // pred_region
          %472 = vst [vmem:[#allocation2] sm:$0xff] 0.0
          %473 = vst [vmem:[#allocation2 + $0x8] sm:$0xff] 0.0
          %474 = vst [vmem:[#allocation2 + $0x10] sm:$0xff] 0.0
          %475 = vst [vmem:[#allocation2 + $0x18] sm:$0xff] 0.0
        $region48: #{fast_autoencoder_forward.3} parent=43 // pred_fallthru
          _
        %v476 = vld [vmem:[%s433] sm:$0xff]
        %v477 = vld [vmem:[%s437] sm:$0xff]
        %v478 = vlaneseq
        %v479 = vand.u32 %v478, 127
        %vm480 = vcmp.lt.s32.totalorder %v479, 4
        %v481 = vsel %vm480, %v476, 0.0
        %s482 = smul.u32 %s32, 256
        %v483 = vadd.s32 %v479, 128
        %v484 = vstv %s482
        %v485 = vadd.s32 %v484, %v479
        %v486 = vadd.s32 %v484, %v483
        %487 = vset.pattern.permute.xlu0 0
        %488 = vperm.xlu0 %487, %v477
        %v489 = vpop.permute.xlu0 %488
        %vm490 = vcmp.eq.s32.totalorder %v489, %v485
        %vm491 = vcmp.eq.s32.totalorder %v489, %v486
        %493 = vset.pattern.permute.xlu0 0
        %494 = vperm.xlu0 %493, %v481
        %v495 = vpop.permute.xlu0 %494
        %498 = vset.pattern.permute.xlu0 0
        %499 = vperm.xlu0 %498, %v476
        %v500 = vpop.permute.xlu0 %499
        %v502 = vsel %vm490, %v495, 0.0
        %v503 = vsel %vm491, %v495, 0.0
        %v504 = vsel %vm490, %v500, 0.0
        %v505 = vsel %vm491, %v500, 0.0
        %v506 = vadd.f32 %v502, 0.0
        %v507 = vadd.f32 %v503, 0.0
        %v508 = vadd.f32 %v504, 0.0
        %v509 = vadd.f32 %v505, 0.0
        %510 = vset.pattern.permute.xlu0 1
        %511 = vperm.xlu0 %510, %v477
        %v512 = vpop.permute.xlu0 %511
        %vm513 = vcmp.eq.s32.totalorder %v512, %v485
        %vm514 = vcmp.eq.s32.totalorder %v512, %v486
        %515 = vset.pattern.permute.xlu0 1
        %516 = vperm.xlu0 %515, %v481
        %v517 = vpop.permute.xlu0 %516
        %519 = vset.pattern.permute.xlu0 1
        %520 = vperm.xlu0 %519, %v476
        %v521 = vpop.permute.xlu0 %520
        %v523 = vsel %vm513, %v517, 0.0
        %v524 = vsel %vm514, %v517, 0.0
        %v525 = vsel %vm513, %v521, 0.0
        %v526 = vsel %vm514, %v521, 0.0
        %v527 = vadd.f32 %v506, %v523
        %v528 = vadd.f32 %v507, %v524
        %v529 = vadd.f32 %v508, %v525
        %v530 = vadd.f32 %v509, %v526
        %531 = vset.pattern.permute.xlu0 2
        %532 = vperm.xlu0 %531, %v477
        %v533 = vpop.permute.xlu0 %532
        %vm534 = vcmp.eq.s32.totalorder %v533, %v485
        %vm535 = vcmp.eq.s32.totalorder %v533, %v486
        %536 = vset.pattern.permute.xlu0 2
        %537 = vperm.xlu0 %536, %v481
        %v538 = vpop.permute.xlu0 %537
        %540 = vset.pattern.permute.xlu0 2
        %541 = vperm.xlu0 %540, %v476
        %v542 = vpop.permute.xlu0 %541
        %v544 = vsel %vm534, %v538, 0.0
        %v545 = vsel %vm535, %v538, 0.0
        %v546 = vsel %vm534, %v542, 0.0
        %v547 = vsel %vm535, %v542, 0.0
        %v548 = vadd.f32 %v527, %v544
        %v549 = vadd.f32 %v528, %v545
        %v550 = vadd.f32 %v529, %v546
        %v551 = vadd.f32 %v530, %v547
        %552 = vset.pattern.permute.xlu0 3
        %553 = vperm.xlu0 %552, %v477
        %v554 = vpop.permute.xlu0 %553
        %vm555 = vcmp.eq.s32.totalorder %v554, %v485
        %vm556 = vcmp.eq.s32.totalorder %v554, %v486
        %557 = vset.pattern.permute.xlu0 3
        %558 = vperm.xlu0 %557, %v481
        %v559 = vpop.permute.xlu0 %558
        %561 = vset.pattern.permute.xlu0 3
        %562 = vperm.xlu0 %561, %v476
        %v563 = vpop.permute.xlu0 %562
        %v565 = vsel %vm555, %v559, 0.0
        %v566 = vsel %vm556, %v559, 0.0
        %v567 = vsel %vm555, %v563, 0.0
        %v568 = vsel %vm556, %v563, 0.0
        %v569 = vadd.f32 %v548, %v565
        %v570 = vadd.f32 %v549, %v566
        %v571 = vadd.f32 %v550, %v567
        %v572 = vadd.f32 %v551, %v568
        %573 = vset.pattern.permute.xlu0 4
        %574 = vperm.xlu0 %573, %v477
        %v575 = vpop.permute.xlu0 %574
        %vm576 = vcmp.eq.s32.totalorder %v575, %v485
        %vm577 = vcmp.eq.s32.totalorder %v575, %v486
        %578 = vset.pattern.permute.xlu0 4
        %579 = vperm.xlu0 %578, %v481
        %v580 = vpop.permute.xlu0 %579
        %582 = vset.pattern.permute.xlu0 4
        %583 = vperm.xlu0 %582, %v476
        %v584 = vpop.permute.xlu0 %583
        %v586 = vsel %vm576, %v580, 0.0
        %v587 = vsel %vm577, %v580, 0.0
        %v588 = vsel %vm576, %v584, 0.0
        %v589 = vsel %vm577, %v584, 0.0
        %v590 = vadd.f32 %v569, %v586
        %v591 = vadd.f32 %v570, %v587
        %v592 = vadd.f32 %v571, %v588
        %v593 = vadd.f32 %v572, %v589
        %594 = vset.pattern.permute.xlu0 5
        %595 = vperm.xlu0 %594, %v477
        %v596 = vpop.permute.xlu0 %595
        %vm597 = vcmp.eq.s32.totalorder %v596, %v485
        %vm598 = vcmp.eq.s32.totalorder %v596, %v486
        %599 = vset.pattern.permute.xlu0 5
        %600 = vperm.xlu0 %599, %v481
        %v601 = vpop.permute.xlu0 %600
        %603 = vset.pattern.permute.xlu0 5
        %604 = vperm.xlu0 %603, %v476
        %v605 = vpop.permute.xlu0 %604
        %v607 = vsel %vm597, %v601, 0.0
        %v608 = vsel %vm598, %v601, 0.0
        %v609 = vsel %vm597, %v605, 0.0
        %v610 = vsel %vm598, %v605, 0.0
        %v611 = vadd.f32 %v590, %v607
        %v612 = vadd.f32 %v591, %v608
        %v613 = vadd.f32 %v592, %v609
        %v614 = vadd.f32 %v593, %v610
        %615 = vset.pattern.permute.xlu0 6
        %616 = vperm.xlu0 %615, %v477
        %v617 = vpop.permute.xlu0 %616
        %vm618 = vcmp.eq.s32.totalorder %v617, %v485
        %vm619 = vcmp.eq.s32.totalorder %v617, %v486
        %620 = vset.pattern.permute.xlu0 6
        %621 = vperm.xlu0 %620, %v481
        %v622 = vpop.permute.xlu0 %621
        %624 = vset.pattern.permute.xlu0 6
        %625 = vperm.xlu0 %624, %v476
        %v626 = vpop.permute.xlu0 %625
        %v628 = vsel %vm618, %v622, 0.0
        %v629 = vsel %vm619, %v622, 0.0
        %v630 = vsel %vm618, %v626, 0.0
        %v631 = vsel %vm619, %v626, 0.0
        %v632 = vadd.f32 %v611, %v628
        %v633 = vadd.f32 %v612, %v629
        %v634 = vadd.f32 %v613, %v630
        %v635 = vadd.f32 %v614, %v631
        %636 = vset.pattern.permute.xlu0 7
        %637 = vperm.xlu0 %636, %v477
        %v638 = vpop.permute.xlu0 %637
        %vm639 = vcmp.eq.s32.totalorder %v638, %v485
        %vm640 = vcmp.eq.s32.totalorder %v638, %v486
        %641 = vset.pattern.permute.xlu0 7
        %642 = vperm.xlu0 %641, %v481
        %v643 = vpop.permute.xlu0 %642
        %645 = vset.pattern.permute.xlu0 7
        %646 = vperm.xlu0 %645, %v476
        %v647 = vpop.permute.xlu0 %646
        %v649 = vsel %vm639, %v643, 0.0
        %v650 = vsel %vm640, %v643, 0.0
        %v651 = vsel %vm639, %v647, 0.0
        %v652 = vsel %vm640, %v647, 0.0
        %v653 = vadd.f32 %v632, %v649
        %v654 = vadd.f32 %v633, %v650
        %v655 = vadd.f32 %v634, %v651
        %v656 = vadd.f32 %v635, %v652
        %657 = vset.pattern.permute.xlu0 8
        %658 = vperm.xlu0 %657, %v477
        %v659 = vpop.permute.xlu0 %658
        %vm660 = vcmp.eq.s32.totalorder %v659, %v485
        %vm661 = vcmp.eq.s32.totalorder %v659, %v486
        %662 = vset.pattern.permute.xlu0 8
        %663 = vperm.xlu0 %662, %v481
        %v664 = vpop.permute.xlu0 %663
        %666 = vset.pattern.permute.xlu0 8
        %667 = vperm.xlu0 %666, %v476
        %v668 = vpop.permute.xlu0 %667
        %v670 = vsel %vm660, %v664, 0.0
        %v671 = vsel %vm661, %v664, 0.0
        %v672 = vsel %vm660, %v668, 0.0
        %v673 = vsel %vm661, %v668, 0.0
        %v674 = vadd.f32 %v653, %v670
        %v675 = vadd.f32 %v654, %v671
        %v676 = vadd.f32 %v655, %v672
        %v677 = vadd.f32 %v656, %v673
        %678 = vset.pattern.permute.xlu0 9
        %679 = vperm.xlu0 %678, %v477
        %v680 = vpop.permute.xlu0 %679
        %vm681 = vcmp.eq.s32.totalorder %v680, %v485
        %vm682 = vcmp.eq.s32.totalorder %v680, %v486
        %683 = vset.pattern.permute.xlu0 9
        %684 = vperm.xlu0 %683, %v481
        %v685 = vpop.permute.xlu0 %684
        %687 = vset.pattern.permute.xlu0 9
        %688 = vperm.xlu0 %687, %v476
        %v689 = vpop.permute.xlu0 %688
        %v691 = vsel %vm681, %v685, 0.0
        %v692 = vsel %vm682, %v685, 0.0
        %v693 = vsel %vm681, %v689, 0.0
        %v694 = vsel %vm682, %v689, 0.0
        %v695 = vadd.f32 %v674, %v691
        %v696 = vadd.f32 %v675, %v692
        %v697 = vadd.f32 %v676, %v693
        %v698 = vadd.f32 %v677, %v694
        %699 = vset.pattern.permute.xlu0 10
        %700 = vperm.xlu0 %699, %v477
        %v701 = vpop.permute.xlu0 %700
        %vm702 = vcmp.eq.s32.totalorder %v701, %v485
        %vm703 = vcmp.eq.s32.totalorder %v701, %v486
        %704 = vset.pattern.permute.xlu0 10
        %705 = vperm.xlu0 %704, %v481
        %v706 = vpop.permute.xlu0 %705
        %708 = vset.pattern.permute.xlu0 10
        %709 = vperm.xlu0 %708, %v476
        %v710 = vpop.permute.xlu0 %709
        %v712 = vsel %vm702, %v706, 0.0
        %v713 = vsel %vm703, %v706, 0.0
        %v714 = vsel %vm702, %v710, 0.0
        %v715 = vsel %vm703, %v710, 0.0
        %v716 = vadd.f32 %v695, %v712
        %v717 = vadd.f32 %v696, %v713
        %v718 = vadd.f32 %v697, %v714
        %v719 = vadd.f32 %v698, %v715
        %720 = vset.pattern.permute.xlu0 11
        %721 = vperm.xlu0 %720, %v477
        %v722 = vpop.permute.xlu0 %721
        %vm723 = vcmp.eq.s32.totalorder %v722, %v485
        %vm724 = vcmp.eq.s32.totalorder %v722, %v486
        %725 = vset.pattern.permute.xlu0 11
        %726 = vperm.xlu0 %725, %v481
        %v727 = vpop.permute.xlu0 %726
        %729 = vset.pattern.permute.xlu0 11
        %730 = vperm.xlu0 %729, %v476
        %v731 = vpop.permute.xlu0 %730
        %v733 = vsel %vm723, %v727, 0.0
        %v734 = vsel %vm724, %v727, 0.0
        %v735 = vsel %vm723, %v731, 0.0
        %v736 = vsel %vm724, %v731, 0.0
        %v737 = vadd.f32 %v716, %v733
        %v738 = vadd.f32 %v717, %v734
        %v739 = vadd.f32 %v718, %v735
        %v740 = vadd.f32 %v719, %v736
        %741 = vset.pattern.permute.xlu0 12
        %742 = vperm.xlu0 %741, %v477
        %v743 = vpop.permute.xlu0 %742
        %vm744 = vcmp.eq.s32.totalorder %v743, %v485
        %vm745 = vcmp.eq.s32.totalorder %v743, %v486
        %746 = vset.pattern.permute.xlu0 12
        %747 = vperm.xlu0 %746, %v481
        %v748 = vpop.permute.xlu0 %747
        %750 = vset.pattern.permute.xlu0 12
        %751 = vperm.xlu0 %750, %v476
        %v752 = vpop.permute.xlu0 %751
        %v754 = vsel %vm744, %v748, 0.0
        %v755 = vsel %vm745, %v748, 0.0
        %v756 = vsel %vm744, %v752, 0.0
        %v757 = vsel %vm745, %v752, 0.0
        %v758 = vadd.f32 %v737, %v754
        %v759 = vadd.f32 %v738, %v755
        %v760 = vadd.f32 %v739, %v756
        %v761 = vadd.f32 %v740, %v757
        %762 = vset.pattern.permute.xlu0 13
        %763 = vperm.xlu0 %762, %v477
        %v764 = vpop.permute.xlu0 %763
        %vm765 = vcmp.eq.s32.totalorder %v764, %v485
        %vm766 = vcmp.eq.s32.totalorder %v764, %v486
        %767 = vset.pattern.permute.xlu0 13
        %768 = vperm.xlu0 %767, %v481
        %v769 = vpop.permute.xlu0 %768
        %771 = vset.pattern.permute.xlu0 13
        %772 = vperm.xlu0 %771, %v476
        %v773 = vpop.permute.xlu0 %772
        %v775 = vsel %vm765, %v769, 0.0
        %v776 = vsel %vm766, %v769, 0.0
        %v777 = vsel %vm765, %v773, 0.0
        %v778 = vsel %vm766, %v773, 0.0
        %v779 = vadd.f32 %v758, %v775
        %v780 = vadd.f32 %v759, %v776
        %v781 = vadd.f32 %v760, %v777
        %v782 = vadd.f32 %v761, %v778
        %783 = vset.pattern.permute.xlu0 14
        %784 = vperm.xlu0 %783, %v477
        %v785 = vpop.permute.xlu0 %784
        %vm786 = vcmp.eq.s32.totalorder %v785, %v485
        %vm787 = vcmp.eq.s32.totalorder %v785, %v486
        %788 = vset.pattern.permute.xlu0 14
        %789 = vperm.xlu0 %788, %v481
        %v790 = vpop.permute.xlu0 %789
        %792 = vset.pattern.permute.xlu0 14
        %793 = vperm.xlu0 %792, %v476
        %v794 = vpop.permute.xlu0 %793
        %v796 = vsel %vm786, %v790, 0.0
        %v797 = vsel %vm787, %v790, 0.0
        %v798 = vsel %vm786, %v794, 0.0
        %v799 = vsel %vm787, %v794, 0.0
        %v800 = vadd.f32 %v779, %v796
        %v801 = vadd.f32 %v780, %v797
        %v802 = vadd.f32 %v781, %v798
        %v803 = vadd.f32 %v782, %v799
        %804 = vset.pattern.permute.xlu0 15
        %805 = vperm.xlu0 %804, %v477
        %v806 = vpop.permute.xlu0 %805
        %vm807 = vcmp.eq.s32.totalorder %v806, %v485
        %vm808 = vcmp.eq.s32.totalorder %v806, %v486
        %809 = vset.pattern.permute.xlu0 15
        %810 = vperm.xlu0 %809, %v481
        %v811 = vpop.permute.xlu0 %810
        %813 = vset.pattern.permute.xlu0 15
        %814 = vperm.xlu0 %813, %v476
        %v815 = vpop.permute.xlu0 %814
        %v817 = vsel %vm807, %v811, 0.0
        %v818 = vsel %vm808, %v811, 0.0
        %v819 = vsel %vm807, %v815, 0.0
        %v820 = vsel %vm808, %v815, 0.0
        %v821 = vadd.f32 %v800, %v817
        %v822 = vadd.f32 %v801, %v818
        %v823 = vadd.f32 %v802, %v819
        %v824 = vadd.f32 %v803, %v820
        %v825 = vld [vmem:[#allocation2] sm:$0xff]
        %v826 = vld [vmem:[#allocation2 + $0x8] sm:$0xff]
        %v827 = vld [vmem:[#allocation2 + $0x10] sm:$0xff]
        %v828 = vld [vmem:[#allocation2 + $0x18] sm:$0xff]
        %v829 = vpack.c.bf16 %v823, %v821
        %v830 = vpack.c.bf16 %v824, %v822
        %v831 = vld [vmem:[%s458] sm:$0xff]
        %v832 = vld [vmem:[%s458 + $0x8] sm:$0xff]
        %v833 = vld [vmem:[%s458 + $0x10] sm:$0xff]
        %v834 = vld [vmem:[%s458 + $0x18] sm:$0xff]
        %v835 = vld [vmem:[%s458 + $0x20] sm:$0xff]
        %v836 = vld [vmem:[%s458 + $0x28] sm:$0xff]
        %v837 = vld [vmem:[%s458 + $0x30] sm:$0xff]
        %v838 = vld [vmem:[%s458 + $0x38] sm:$0xff]
        %v839 = vld [vmem:[%s458 + $0x40] sm:$0xff]
        %v840 = vld [vmem:[%s458 + $0x48] sm:$0xff]
        %v841 = vld [vmem:[%s458 + $0x50] sm:$0xff]
        %v842 = vld [vmem:[%s458 + $0x58] sm:$0xff]
        %v843 = vld [vmem:[%s458 + $0x60] sm:$0xff]
        %v844 = vld [vmem:[%s458 + $0x68] sm:$0xff]
        %v845 = vld [vmem:[%s458 + $0x70] sm:$0xff]
        %v846 = vld [vmem:[%s458 + $0x78] sm:$0xff]
        %v847 = vld [vmem:[%s458 + $0x80] sm:$0xff]
        %v848 = vld [vmem:[%s458 + $0x88] sm:$0xff]
        %v849 = vld [vmem:[%s458 + $0x90] sm:$0xff]
        %v850 = vld [vmem:[%s458 + $0x98] sm:$0xff]
        %v851 = vld [vmem:[%s458 + $0xa0] sm:$0xff]
        %v852 = vld [vmem:[%s458 + $0xa8] sm:$0xff]
        %v853 = vld [vmem:[%s458 + $0xb0] sm:$0xff]
        %v854 = vld [vmem:[%s458 + $0xb8] sm:$0xff]
        %v855 = vld [vmem:[%s458 + $0xc0] sm:$0xff]
        %v856 = vld [vmem:[%s458 + $0xc8] sm:$0xff]
        %v857 = vld [vmem:[%s458 + $0xd0] sm:$0xff]
        %v858 = vld [vmem:[%s458 + $0xd8] sm:$0xff]
        %v859 = vld [vmem:[%s458 + $0xe0] sm:$0xff]
        %v860 = vld [vmem:[%s458 + $0xe8] sm:$0xff]
        %v861 = vld [vmem:[%s458 + $0xf0] sm:$0xff]
        %v862 = vld [vmem:[%s458 + $0xf8] sm:$0xff]
        %v895 = vunpack.c.l.b16 %v831
        %v896 = vunpack.c.h.b16 %v831
        %v897 = vunpack.c.l.b16 %v832
        %v898 = vunpack.c.h.b16 %v832
        %v899 = vunpack.c.l.b16 %v833
        %v900 = vunpack.c.h.b16 %v833
        %v901 = vunpack.c.l.b16 %v834
        %v902 = vunpack.c.h.b16 %v834
        %v903 = vunpack.c.l.b16 %v835
        %v904 = vunpack.c.h.b16 %v835
        %v905 = vunpack.c.l.b16 %v836
        %v906 = vunpack.c.h.b16 %v836
        %v907 = vunpack.c.l.b16 %v837
        %v908 = vunpack.c.h.b16 %v837
        %v909 = vunpack.c.l.b16 %v838
        %v910 = vunpack.c.h.b16 %v838
        %v911 = vunpack.c.l.b16 %v839
        %v912 = vunpack.c.h.b16 %v839
        %v913 = vunpack.c.l.b16 %v840
        %v914 = vunpack.c.h.b16 %v840
        %v915 = vunpack.c.l.b16 %v841
        %v916 = vunpack.c.h.b16 %v841
        %v917 = vunpack.c.l.b16 %v842
        %v918 = vunpack.c.h.b16 %v842
        %v919 = vunpack.c.l.b16 %v843
        %v920 = vunpack.c.h.b16 %v843
        %v921 = vunpack.c.l.b16 %v844
        %v922 = vunpack.c.h.b16 %v844
        %v923 = vunpack.c.l.b16 %v845
        %v924 = vunpack.c.h.b16 %v845
        %v925 = vunpack.c.l.b16 %v846
        %v926 = vunpack.c.h.b16 %v846
        %v927 = vunpack.c.l.b16 %v847
        %v928 = vunpack.c.h.b16 %v847
        %v929 = vunpack.c.l.b16 %v848
        %v930 = vunpack.c.h.b16 %v848
        %v931 = vunpack.c.l.b16 %v849
        %v932 = vunpack.c.h.b16 %v849
        %v933 = vunpack.c.l.b16 %v850
        %v934 = vunpack.c.h.b16 %v850
        %v935 = vunpack.c.l.b16 %v851
        %v936 = vunpack.c.h.b16 %v851
        %v937 = vunpack.c.l.b16 %v852
        %v938 = vunpack.c.h.b16 %v852
        %v939 = vunpack.c.l.b16 %v853
        %v940 = vunpack.c.h.b16 %v853
        %v941 = vunpack.c.l.b16 %v854
        %v942 = vunpack.c.h.b16 %v854
        %v943 = vunpack.c.l.b16 %v855
        %v944 = vunpack.c.h.b16 %v855
        %v945 = vunpack.c.l.b16 %v856
        %v946 = vunpack.c.h.b16 %v856
        %v947 = vunpack.c.l.b16 %v857
        %v948 = vunpack.c.h.b16 %v857
        %v949 = vunpack.c.l.b16 %v858
        %v950 = vunpack.c.h.b16 %v858
        %v951 = vunpack.c.l.b16 %v859
        %v952 = vunpack.c.h.b16 %v859
        %v953 = vunpack.c.l.b16 %v860
        %v954 = vunpack.c.h.b16 %v860
        %v955 = vunpack.c.l.b16 %v861
        %v956 = vunpack.c.h.b16 %v861
        %v957 = vunpack.c.l.b16 %v862
        %v958 = vunpack.c.h.b16 %v862
        %v959 = vpack.c.b16 %v897, %v895
        %v960 = vpack.c.b16 %v898, %v896
        %v961 = vpack.c.b16 %v901, %v899
        %v962 = vpack.c.b16 %v902, %v900
        %v963 = vpack.c.b16 %v905, %v903
        %v964 = vpack.c.b16 %v906, %v904
        %v965 = vpack.c.b16 %v909, %v907
        %v966 = vpack.c.b16 %v910, %v908
        %v967 = vpack.c.b16 %v913, %v911
        %v968 = vpack.c.b16 %v914, %v912
        %v969 = vpack.c.b16 %v917, %v915
        %v970 = vpack.c.b16 %v918, %v916
        %v971 = vpack.c.b16 %v921, %v919
        %v972 = vpack.c.b16 %v922, %v920
        %v973 = vpack.c.b16 %v925, %v923
        %v974 = vpack.c.b16 %v926, %v924
        %v975 = vpack.c.b16 %v929, %v927
        %v976 = vpack.c.b16 %v930, %v928
        %v977 = vpack.c.b16 %v933, %v931
        %v978 = vpack.c.b16 %v934, %v932
        %v979 = vpack.c.b16 %v937, %v935
        %v980 = vpack.c.b16 %v938, %v936
        %v981 = vpack.c.b16 %v941, %v939
        %v982 = vpack.c.b16 %v942, %v940
        %v983 = vpack.c.b16 %v945, %v943
        %v984 = vpack.c.b16 %v946, %v944
        %v985 = vpack.c.b16 %v949, %v947
        %v986 = vpack.c.b16 %v950, %v948
        %v987 = vpack.c.b16 %v953, %v951
        %v988 = vpack.c.b16 %v954, %v952
        %v989 = vpack.c.b16 %v957, %v955
        %v990 = vpack.c.b16 %v958, %v956
        %1023 = vmatprep.subr.bf16.mxu0 %v960
        %1024 = vmatpush1.bf16.msra.mxu0 %v959
        %1025 = vmatprep.subr.bf16.mxu0 %v962
        %1026 = vmatpush1.bf16.msra.mxu0 %v961
        %1027 = vmatprep.subr.bf16.mxu0 %v964
        %1028 = vmatpush1.bf16.msra.mxu0 %v963
        %1029 = vmatprep.subr.bf16.mxu0 %v966
        %1030 = vmatpush1.bf16.msra.mxu0 %v965
        %1031 = vmatprep.subr.bf16.mxu0 %v968
        %1032 = vmatpush1.bf16.msra.mxu0 %v967
        %1033 = vmatprep.subr.bf16.mxu0 %v970
        %1034 = vmatpush1.bf16.msra.mxu0 %v969
        %1035 = vmatprep.subr.bf16.mxu0 %v972
        %1036 = vmatpush1.bf16.msra.mxu0 %v971
        %1037 = vmatprep.subr.bf16.mxu0 %v974
        %1038 = vmatpush1.bf16.msra.mxu0 %v973
        %1039 = vmatprep.subr.bf16.mxu0 %v976
        %1040 = vmatpush1.bf16.msra.mxu0 %v975
        %1041 = vmatprep.subr.bf16.mxu0 %v978
        %1042 = vmatpush1.bf16.msra.mxu0 %v977
        %1043 = vmatprep.subr.bf16.mxu0 %v980
        %1044 = vmatpush1.bf16.msra.mxu0 %v979
        %1045 = vmatprep.subr.bf16.mxu0 %v982
        %1046 = vmatpush1.bf16.msra.mxu0 %v981
        %1047 = vmatprep.subr.bf16.mxu0 %v984
        %1048 = vmatpush1.bf16.msra.mxu0 %v983
        %1049 = vmatprep.subr.bf16.mxu0 %v986
        %1050 = vmatpush1.bf16.msra.mxu0 %v985
        %1051 = vmatprep.subr.bf16.mxu0 %v988
        %1052 = vmatpush1.bf16.msra.mxu0 %v987
        %1053 = vmatprep.subr.bf16.mxu0 %v990
        %1054 = vmatpush1.bf16.msra.mxu0 %v989
        %1055 = vmatprep.mubr.bf16.mxu0 %v830
        %1056 = vmatmul.mubr.bf16.gmra.mrb[0].mxu0 %v829
        %v1057 = vpop.f32.mrb[0].mxu0
        %v1058 = vadd.f32 0.0, %v1057
        %v1059 = vpop.f32.mrb[0].mxu0
        %v1060 = vadd.f32 0.0, %v1059
        %v1061 = vpop.f32.mrb[0].mxu0
        %v1062 = vadd.f32 0.0, %v1061
        %v1063 = vpop.f32.mrb[0].mxu0
        %v1064 = vadd.f32 0.0, %v1063
        %1065 = vdwg.mxu0
        %v1066 = vadd.f32 %v825, %v1058
        %v1067 = vadd.f32 %v826, %v1060
        %v1068 = vadd.f32 %v827, %v1062
        %v1069 = vadd.f32 %v828, %v1064
        %1070 = vst [vmem:[#allocation2] sm:$0xff] %v1066
        %1071 = vst [vmem:[#allocation2 + $0x8] sm:$0xff] %v1067
        %1072 = vst [vmem:[#allocation2 + $0x10] sm:$0xff] %v1068
        %1073 = vst [vmem:[#allocation2 + $0x18] sm:$0xff] %v1069
        %v1074 = vld [vmem:[%s446] sm:$0xff]
        %v1075 = vld [vmem:[%s446 + $0x8] sm:$0xff]
        %v1076 = vld [vmem:[%s451] sm:$0x3]
        %v1078 = vlaneseq
        %v1079 = vshrl.u32 %v1078, 7
        %v1080 = vsub.s32 0, %v1079
        %v1081 = vrot.slane %v1076, %v1080
        %v1082 = vlaneseq
        %v1083 = vshrl.u32 %v1082, 7
        %v1084 = vsub.s32 1, %v1083
        %v1085 = vrot.slane %v1076, %v1084
        %v1088 = vmul.f32 %v1074, %v1081
        %v1089 = vmul.f32 %v1075, %v1085
        // Predicated region
        $region49: #{fast_autoencoder_forward.3} parent=43 // pred_check
          %p1090 = pneg %p468
        $region50: #{fast_autoencoder_forward.3} parent=43 // pred_check_branch
          %1092 = sbr.rel (%p1090) target = $region52
        $region51: #{fast_autoencoder_forward.3} parent=43 // pred_region
          %1093 = vst [vmem:[#allocation3] sm:$0xff] -inf
          %1094 = vst [vmem:[#allocation4] sm:$0xff] 1073741824
        $region52: #{fast_autoencoder_forward.3} parent=43 // pred_fallthru
          _
        %v1095 = vld [vmem:[#allocation3] sm:$0xff]
        %v1096 = vld [vmem:[#allocation4] sm:$0xff]
        loop: start=0, step=1, limit=8
        $region53: #{fast_autoencoder_forward.3} parent=43 // loop_pre_header
          _
        $region54: #{fast_autoencoder_forward.3} parent=43 // loop_header
          %s1098 = sphi 0, %s1102
          %p1099 = scmp.ge.s32.totalorder %s1098, 8
          %v1103 = vphi %v1088, %v1158
          %v1104 = vphi %v1089, %v1159
          %v1105 = vphi %v1095, %v1161
          %v1106 = vphi -inf, %v1154
          %v1107 = vphi 1073741824, %v1155
        $region55: #{fast_autoencoder_forward.3} parent=43 // loop_header_branch
          %1101 = sbr.rel (%p1099) target = $region59
        $region56: #{fast_autoencoder_forward.3} parent=43 // loop_body
          %v1108 = vmax.f32 %v1103, %v1104
          %1109 = vmax.xlane.f32.xlu0 %v1108
          %v1110 = vpop.xlane.xlu0 %1109
          %1111 = vmax.xlane.f32.xlu0 %v1105
          %v1112 = vpop.xlane.xlu0 %1111
          %v1113 = vmax.f32 %v1110, %v1112
          %vm1114 = vcmp.eq.f32.partialorder %v1103, %v1113
          %vm1115 = vcmp.eq.f32.partialorder %v1104, %v1113
          %v1116 = vsel %vm1114, %v485, 1073741824
          %v1117 = vsel %vm1115, %v486, 1073741824
          %vm1118 = vcmp.lt.s32.totalorder %v1116, %v1117
          %v1119 = vsel %vm1118, %v1116, %v1117
          %v1120 = vand.u32 %v1119, 65535
          %v1121 = vshra.s32 %v1119, 16
          %v1122 = vcvt.s32.f32 %v1120
          %v1123 = vcvt.s32.f32 %v1121
          %1124 = vmin.xlane.f32.xlu0 %v1123
          %v1125 = vpop.xlane.xlu0 %1124
          %vm1126 = vcmp.eq.f32.partialorder %v1123, %v1125
          %v1127 = vsel %vm1126, %v1122, inf
          %1128 = vmin.xlane.f32.xlu0 %v1127
          %v1129 = vpop.xlane.xlu0 %1128
          %v1130 = vcvt.f32.s32 %v1129
          %v1131 = vcvt.f32.s32 %v1125
          %v1132 = vshll.u32 %v1131, 16
          %v1133 = vadd.s32 %v1132, %v1130
          %vm1134 = vcmp.eq.f32.partialorder %v1105, %v1113
          %v1135 = vsel %vm1134, %v1096, 1073741824
          %v1136 = vand.u32 %v1135, 65535
          %v1137 = vshra.s32 %v1135, 16
          %v1138 = vcvt.s32.f32 %v1136
          %v1139 = vcvt.s32.f32 %v1137
          %1140 = vmin.xlane.f32.xlu0 %v1139
          %v1141 = vpop.xlane.xlu0 %1140
          %vm1142 = vcmp.eq.f32.partialorder %v1139, %v1141
          %v1143 = vsel %vm1142, %v1138, inf
          %1144 = vmin.xlane.f32.xlu0 %v1143
          %v1145 = vpop.xlane.xlu0 %1144
          %v1146 = vcvt.f32.s32 %v1145
          %v1147 = vcvt.f32.s32 %v1141
          %v1148 = vshll.u32 %v1147, 16
          %v1149 = vadd.s32 %v1148, %v1146
          %vm1150 = vcmp.lt.s32.totalorder %v1133, %v1149
          %v1151 = vsel %vm1150, %v1133, %v1149
          %v1152 = vstv %s1098
          %vm1153 = vcmp.eq.s32.totalorder %v479, %v1152
          %v1154 = vsel %vm1153, %v1113, %v1106
          %v1155 = vsel %vm1153, %v1151, %v1107
          %vm1156 = vcmp.eq.s32.totalorder %v485, %v1151
          %vm1157 = vcmp.eq.s32.totalorder %v486, %v1151
          %v1158 = vsel %vm1156, -inf, %v1103
          %v1159 = vsel %vm1157, -inf, %v1104
          %vm1160 = vcmp.eq.s32.totalorder %v1096, %v1151
          %v1161 = vsel %vm1160, -inf, %v1105
        $region57: #{fast_autoencoder_forward.3} parent=43 // loop_footer
          %s1102 = sadd.s32 1, %s1098
        $region58: #{fast_autoencoder_forward.3} parent=43 // loop_footer_branch
          %1097 = sbr.rel target = $region54
        $region59: #{fast_autoencoder_forward.3} parent=43 // loop_exit
          _
        %1162 = vst [vmem:[#allocation3] sm:$0xff] %v1106
        %1163 = vst [vmem:[#allocation4] sm:$0xff] %v1107
        %p1164 = scmp.eq.s32.totalorder %s32, 1
        // Predicated region
        $region60: #{fast_autoencoder_forward.3} parent=43 // pred_check
          %p1165 = pneg %p1164
        $region61: #{fast_autoencoder_forward.3} parent=43 // pred_check_branch
          %1167 = sbr.rel (%p1165) target = $region63
        $region62: #{fast_autoencoder_forward.3} parent=43 // pred_region
          %v1168 = vmax.f32 %v1106, 0.0
          %1169 = vst [vmem:[%s463] sm:$0xff] %v1168
          %vm1170 = vcmp.lt.s32.totalorder %v479, 8
          %v1171 = vsel %vm1170, %v1107, 0
          %1172 = vst [vmem:[%s467] sm:$0xff] %v1171
          %v1173 = vld [vmem:[#allocation2] sm:$0xff]
          %v1174 = vld [vmem:[#allocation2 + $0x8] sm:$0xff]
          %v1175 = vld [vmem:[#allocation2 + $0x10] sm:$0xff]
          %v1176 = vld [vmem:[#allocation2 + $0x18] sm:$0xff]
          %v1177 = vld [vmem:[%s5] sm:$0x3]
          %v1179 = vlaneseq
          %v1180 = vshrl.u32 %v1179, 7
          %v1181 = vsub.s32 0, %v1180
          %v1182 = vrot.slane %v1177, %v1181
          %v1183 = vlaneseq
          %v1184 = vshrl.u32 %v1183, 7
          %v1185 = vsub.s32 1, %v1184
          %v1186 = vrot.slane %v1177, %v1185
          %v1189 = vadd.f32 %v1173, %v1182
          %v1190 = vadd.f32 %v1174, %v1186
          %v1191 = vadd.f32 %v1175, %v1182
          %v1192 = vadd.f32 %v1176, %v1186
          %1193 = vst [vmem:[%s410] sm:$0xff] %v1189
          %1194 = vst [vmem:[%s410 + $0x8] sm:$0xff] %v1190
          %1195 = vst [vmem:[%s417] sm:$0xff] %v1191
          %1196 = vst [vmem:[%s417 + $0x8] sm:$0xff] %v1192
        $region63: #{fast_autoencoder_forward.3} parent=43 // pred_fallthru
          _
        %s1197 = sand.u32 %s200, 1
        %s1198 = scalar_lea.sflag [#allocation6], %s1197
        %s1199 = sand.u32 %s200, 1
        %s1200 = smul.addr %s1199, 16
        %s1201 = scalar_lea.vmem [#allocation5], %s1200
        %s1202 = sand.u32 %s226, 1
        %s1203 = scalar_lea.sflag [#allocation8], %s1202
        %s1204 = sand.u32 %s226, 1
        %s1205 = smul.addr %s1204, 16
        %s1206 = scalar_lea.vmem [#allocation7], %s1205
        %p1207 = scmp.lt.s32.totalorder %s31, 1
        %s1208 = scalar_select %p1207, %s31, 1
        %s1209 = smul.addr %s1208, 8
        %s1210 = scalar_lea.vmem %s8, %s1209
        %p1211 = scmp.lt.s32.totalorder %s31, 1
        %s1212 = scalar_select %p1211, %s31, 1
        %s1213 = smul.addr %s1212, 8
        %s1214 = scalar_lea.vmem %s9, %s1213
        // Predicated region
        $region64: #{fast_autoencoder_forward.3} parent=43 // pred_check
          %p1215 = pneg %p210
        $region65: #{fast_autoencoder_forward.3} parent=43 // pred_check_branch
          %1217 = sbr.rel (%p1215) target = $region67
        $region66: #{fast_autoencoder_forward.3} parent=43 // pred_region
          %s1219 = ssub.s32 256, 256
          %1220 = vsyncadd %s1198, %s1219
          %s1221 = smul.addr %s31, 2
          %s1222 = smul.addr %s1221, 128
          %s1223 = scalar_lea.hbm %s6, %s1222
          %s1225 = sshll.u32 %s1201, 4
          %s1226 = int_to_ptr.vmem [resolvable:$true] %s1225
          %1228 = dma.vmem_to_hbm [thread:$0]  %s1226, 256, %s1223, %s1198
        $region67: #{fast_autoencoder_forward.3} parent=43 // pred_fallthru
          _
        // Predicated region
        $region68: #{fast_autoencoder_forward.3} parent=43 // pred_check
          %p1229 = pneg %p236
        $region69: #{fast_autoencoder_forward.3} parent=43 // pred_check_branch
          %1231 = sbr.rel (%p1229) target = $region71
        $region70: #{fast_autoencoder_forward.3} parent=43 // pred_region
          %s1233 = ssub.s32 256, 256
          %1234 = vsyncadd %s1203, %s1233
          %s1235 = smul.addr %s31, 2
          %s1236 = smul.addr %s1235, 128
          %s1237 = scalar_lea.hbm %s7, %s1236
          %s1239 = sshll.u32 %s1206, 4
          %s1240 = int_to_ptr.vmem [resolvable:$true] %s1239
          %1242 = dma.vmem_to_hbm [thread:$0]  %s1240, 256, %s1237, %s1203
        $region71: #{fast_autoencoder_forward.3} parent=43 // pred_fallthru
          _
        // Predicated region
        $region72: #{fast_autoencoder_forward.3} parent=43 // pred_check
          %p1243 = pneg %p262
        $region73: #{fast_autoencoder_forward.3} parent=43 // pred_check_branch
          %1245 = sbr.rel (%p1243) target = $region75
        $region74: #{fast_autoencoder_forward.3} parent=43 // pred_region
          _
        $region75: #{fast_autoencoder_forward.3} parent=43 // pred_fallthru
          _
        // Predicated region
        $region76: #{fast_autoencoder_forward.3} parent=43 // pred_check
          %p1246 = pneg %p288
        $region77: #{fast_autoencoder_forward.3} parent=43 // pred_check_branch
          %1248 = sbr.rel (%p1246) target = $region79
        $region78: #{fast_autoencoder_forward.3} parent=43 // pred_region
          _
        $region79: #{fast_autoencoder_forward.3} parent=43 // pred_fallthru
          _
      $region44: #{fast_autoencoder_forward.3} parent=5 // pred_fallthru
        _
      %p1249 = scmp.le.s32.totalorder 2, %s22
      // Predicated region
      $region80: #{fast_autoencoder_forward.3} parent=5 // pred_check
        %p1250 = pneg %p1249
      $region81: #{fast_autoencoder_forward.3} parent=5 // pred_check_branch
        %1252 = sbr.rel (%p1250) target = $region83
      $region82: #{fast_autoencoder_forward.3} parent=5 // pred_region
        %s1253 = ssub.s32 %s22, 2
        // Predicated region
        $region84: #{fast_autoencoder_forward.3} parent=82 // pred_check
          %p1254 = pneg %p216
        $region85: #{fast_autoencoder_forward.3} parent=82 // pred_check_branch
          %1256 = sbr.rel (%p1254) target = $region87
        $region86: #{fast_autoencoder_forward.3} parent=82 // pred_region
          %s1257 = sand.u32 %s201, 1
          %s1258 = scalar_lea.sflag [#allocation6], %s1257
          %s1259 = sand.u32 %s201, 1
          %s1260 = smul.addr %s1259, 16
          %s1261 = scalar_lea.vmem [#allocation5], %s1260
          %1262 = dma.done %s1258, 256
        $region87: #{fast_autoencoder_forward.3} parent=82 // pred_fallthru
          _
        // Predicated region
        $region88: #{fast_autoencoder_forward.3} parent=82 // pred_check
          %p1263 = pneg %p242
        $region89: #{fast_autoencoder_forward.3} parent=82 // pred_check_branch
          %1265 = sbr.rel (%p1263) target = $region91
        $region90: #{fast_autoencoder_forward.3} parent=82 // pred_region
          %s1266 = sand.u32 %s227, 1
          %s1267 = scalar_lea.sflag [#allocation8], %s1266
          %s1268 = sand.u32 %s227, 1
          %s1269 = smul.addr %s1268, 16
          %s1270 = scalar_lea.vmem [#allocation7], %s1269
          %1271 = dma.done %s1267, 256
        $region91: #{fast_autoencoder_forward.3} parent=82 // pred_fallthru
          _
        // Predicated region
        $region92: #{fast_autoencoder_forward.3} parent=82 // pred_check
          %p1272 = pneg %p268
        $region93: #{fast_autoencoder_forward.3} parent=82 // pred_check_branch
          %1274 = sbr.rel (%p1272) target = $region95
        $region94: #{fast_autoencoder_forward.3} parent=82 // pred_region
          %p1275 = scmp.lt.s32.totalorder %s33, 1
          %s1276 = scalar_select %p1275, %s33, 1
          %s1277 = smul.addr %s1276, 8
          %s1278 = scalar_lea.vmem %s8, %s1277
        $region95: #{fast_autoencoder_forward.3} parent=82 // pred_fallthru
          _
        // Predicated region
        $region96: #{fast_autoencoder_forward.3} parent=82 // pred_check
          %p1279 = pneg %p294
        $region97: #{fast_autoencoder_forward.3} parent=82 // pred_check_branch
          %1281 = sbr.rel (%p1279) target = $region99
        $region98: #{fast_autoencoder_forward.3} parent=82 // pred_region
          %p1282 = scmp.lt.s32.totalorder %s33, 1
          %s1283 = scalar_select %p1282, %s33, 1
          %s1284 = smul.addr %s1283, 8
          %s1285 = scalar_lea.vmem %s9, %s1284
        $region99: #{fast_autoencoder_forward.3} parent=82 // pred_fallthru
          _
      $region83: #{fast_autoencoder_forward.3} parent=5 // pred_fallthru
        _
    $region6: #{fast_autoencoder_forward.3} parent=1 // loop_footer
      %s26 = sadd.s32 1, %s22
    $region7: #{fast_autoencoder_forward.3} parent=1 // loop_footer_branch
      %21 = sbr.rel target = $region3
    $region8: #{fast_autoencoder_forward.3} parent=1 // loop_exit
      _
    %1286 = vsyncpa [#allocation6], 1
    %s1287 = scalar_lea.sflag [#allocation6], 1
    %1288 = vsyncpa %s1287, 1
    %1289 = vsyncpa [#allocation8], 1
    %s1290 = scalar_lea.sflag [#allocation8], 1
    %1291 = vsyncpa %s1290, 1

</llo_original>
